<compile_context>
chip_gen: v7x
topology: tpu7x:2x2x1
jax: 0.10.0
libtpu: 0.0.40
codegen_flags: <defaults>
</compile_context>

<pallas_src>
import jax
import jax.numpy as jnp
from jax.experimental import pallas as pl
from jax.experimental.pallas import tpu as pltpu


def _round_up(n, m):
    return (n + m - 1) // m * m


def _mlp_kernel(x_ref, w1_ref, b1_ref, w2_ref, b2_ref, o_ref, acc_ref):
    """One fp_2_dim column block of  out = ReLU(x @ W1 + b1) @ W2 + b2."""
    j = pl.program_id(0)

    @pl.when(j == 0)
    def _init():
        acc_ref[...] = jnp.zeros_like(acc_ref)

    # fc1 column block: bf16 operands on the MXU, f32 accumulation.
    # Each grid step sees the full K reduction, so bias + ReLU here are exact.
    h = jnp.dot(x_ref[...], w1_ref[...], preferred_element_type=jnp.float32)
    h = h + b1_ref[...]            # (1, tile) broadcasts over batch; f32 VPU
    h = jnp.maximum(h, 0.0)        # ReLU in f32 (v5e has no bf16 VALU path)

    # fc2 partial product over this fp2 block, accumulated in f32 scratch.
    # Deliberate bf16 downcast of the post-ReLU activation for the MXU LHS.
    acc_ref[...] += jnp.dot(h.astype(jnp.bfloat16), w2_ref[...],
                            preferred_element_type=jnp.float32)

    @pl.when(j == pl.num_programs(0) - 1)
    def _finalize():
        o_ref[...] = (acc_ref[...] + b2_ref[...]).astype(o_ref.dtype)


def drug_mixedfp_forward(x, w1, b1, w2, b2, *, fp2_tile=128):
    """Eval-mode forward of Drug_MixedFP_Representation.

    x : (B, fp_dim)        mixed fingerprint
    w1: (fp_dim, fp2)      fc1 weight in (in, out) layout
    b1: (fp2,)
    w2: (fp2, hidden)      fc2 weight in (in, out) layout
    b2: (hidden,)
    """
    B, K = x.shape
    fp2 = w1.shape[1]
    hidden = w2.shape[1]

    # ---- one-time layout prep (fused into the surrounding jit) ------------
    # Zero-pad the reduction dim (1489 -> 1536) for aligned lane/sublane tiles;
    # the padded columns/rows are zero so they contribute nothing to the dot.
    Kp = _round_up(K, 128)
    fp2_tile = min(fp2_tile, _round_up(fp2, 128))
    F2p = _round_up(fp2, fp2_tile)

    xp = jnp.zeros((B, Kp), jnp.bfloat16).at[:, :K].set(x.astype(jnp.bfloat16))
    w1p = jnp.zeros((Kp, F2p), jnp.bfloat16).at[:K, :fp2].set(
        w1.astype(jnp.bfloat16))
    b1p = jnp.zeros((1, F2p), jnp.float32).at[:, :fp2].set(
        b1.astype(jnp.float32))
    # Padded w2 rows are zero, so any padded fp2 column of h contributes 0.
    w2p = jnp.zeros((F2p, hidden), jnp.bfloat16).at[:fp2, :].set(
        w2.astype(jnp.bfloat16))
    b2p = b2.reshape(1, hidden).astype(jnp.float32)

    n_blocks = F2p // fp2_tile

    cost = pl.CostEstimate(
        flops=2 * B * (Kp * F2p + F2p * hidden),
        transcendentals=0,
        bytes_accessed=(xp.size * 2 + w1p.size * 2 + w2p.size * 2
                        + b1p.size * 4 + b2p.size * 4 + B * hidden * 4),
    )

    return pl.pallas_call(
        _mlp_kernel,
        out_shape=jax.ShapeDtypeStruct((B, hidden), jnp.float32),
        grid=(n_blocks,),
        in_specs=[
            pl.BlockSpec((B, Kp), lambda j: (0, 0)),             # x (resident)
            pl.BlockSpec((Kp, fp2_tile), lambda j: (0, j)),      # w1 col block
            pl.BlockSpec((1, fp2_tile), lambda j: (0, j)),       # b1 block
            pl.BlockSpec((fp2_tile, hidden), lambda j: (j, 0)),  # w2 row block
            pl.BlockSpec((1, hidden), lambda j: (0, 0)),         # b2 (resident)
        ],
        out_specs=pl.BlockSpec((B, hidden), lambda j: (0, 0)),
        scratch_shapes=[pltpu.VMEM((B, hidden), jnp.float32)],
        compiler_params=pltpu.CompilerParams(
            dimension_semantics=("arbitrary",)),   # fp2 axis is a reduction
        cost_estimate=cost,
    )(xp, w1p, b1p, w2p, b2p)


if __name__ == "__main__":
    # Hyperparameters implied by the module
    FP_DIM = 1489            # fixed in the module
    FP_2_DIM = 512           # hp.mixed_fp_2_dim
    HIDDEN_DIM = 32          # hp.module_out_dim
    BATCH = 8

    key = jax.random.PRNGKey(0)
    k_x, k_w1, k_b1, k_w2, k_b2 = jax.random.split(key, 5)

    # Deterministic synthetic parameters (PyTorch nn.Linear stores (out, in);
    # we keep the transposed (in, out) layout so the kernel computes x @ W).
    x = jax.random.normal(k_x, (BATCH, FP_DIM), dtype=jnp.float32)
    w1 = jax.random.normal(k_w1, (FP_DIM, FP_2_DIM), dtype=jnp.float32) * 0.02
    b1 = jax.random.normal(k_b1, (FP_2_DIM,), dtype=jnp.float32) * 0.02
    w2 = jax.random.normal(k_w2, (FP_2_DIM, HIDDEN_DIM), dtype=jnp.float32) * 0.02
    b2 = jax.random.normal(k_b2, (HIDDEN_DIM,), dtype=jnp.float32) * 0.02

    out = jax.jit(drug_mixedfp_forward)(x, w1, b1, w2, b2)
    out = jax.block_until_ready(out)
    assert out.shape == (BATCH, HIDDEN_DIM)

    # bf16-consistent reference (same rounding of weights/activations as the
    # kernel, f32 accumulation) -> tight tolerance.
    xb = x.astype(jnp.bfloat16).astype(jnp.float32)
    w1b = w1.astype(jnp.bfloat16).astype(jnp.float32)
    w2b = w2.astype(jnp.bfloat16).astype(jnp.float32)
    h = jnp.maximum(xb @ w1b + b1, 0.0)
    ref_bf16 = h.astype(jnp.bfloat16).astype(jnp.float32) @ w2b + b2
    assert jnp.allclose(out, ref_bf16, atol=2e-2, rtol=2e-2), (
        float(jnp.max(jnp.abs(out - ref_bf16))))

    # Sanity check vs. the pure-f32 module forward (loose: bf16 weight storage).
    ref_f32 = jnp.maximum(x @ w1 + b1, 0.0) @ w2 + b2
    assert jnp.allclose(out, ref_f32, atol=5e-2, rtol=5e-2), (
        float(jnp.max(jnp.abs(out - ref_f32))))

    print("KERNEL_OK")
</pallas_src>

<mosaic_0001>
module attributes {stable_mosaic.version = 11 : i64} {
  func.func @_mlp_kernel(%arg0: i32, %arg1: memref<8x1536xbf16, #tpu.memory_space<vmem>>, %arg2: memref<1536x128xbf16, #tpu.memory_space<vmem>>, %arg3: memref<1x128xf32, #tpu.memory_space<vmem>>, %arg4: memref<128x32xbf16, #tpu.memory_space<vmem>>, %arg5: memref<1x32xf32, #tpu.memory_space<vmem>>, %arg6: memref<8x32xf32, #tpu.memory_space<vmem>>, %arg7: memref<8x32xf32, #tpu.memory_space<vmem>>) attributes {dimension_semantics = [#tpu.dimension_semantics<arbitrary>], iteration_bounds = array<i64: 4>, scalar_prefetch = 0 : i64, scratch_operands = 1 : i64, tpu.core_type = #tpu.core_type<tc>, window_params = [{pipeline_mode = #tpu.pipeline_mode<synchronous>, transform_indices = @transform_0, window_bounds = array<i64: 8, 1536>}, {transform_indices = @transform_1, window_bounds = array<i64: 1536, 128>}, {transform_indices = @transform_2, window_bounds = array<i64: 1, 128>}, {transform_indices = @transform_3, window_bounds = array<i64: 128, 32>}, {pipeline_mode = #tpu.pipeline_mode<synchronous>, transform_indices = @transform_4, window_bounds = array<i64: 1, 32>}, {pipeline_mode = #tpu.pipeline_mode<synchronous>, transform_indices = @transform_5, window_bounds = array<i64: 8, 32>}]} {
    %c0_i32 = arith.constant 0 : i32
    %0 = arith.cmpi eq, %arg0, %c0_i32 : i32
    %1 = arith.extui %0 : i1 to i32
    %c0_i32_0 = arith.constant 0 : i32
    %2 = arith.cmpi ne, %1, %c0_i32_0 : i32
    scf.if %2 {
      %cst_15 = arith.constant 0.000000e+00 : f32
      %20 = vector.broadcast %cst_15 : f32 to vector<8x32xf32>
      %c0_16 = arith.constant 0 : index
      %c0_17 = arith.constant 0 : index
      %21 = vector.load %arg7[%c0_16, %c0_17] : memref<8x32xf32, #tpu.memory_space<vmem>>, vector<8x32xf32>
      tpu.vector_store %arg7[%c0_16, %c0_17], %20 {strides = array<i32>} : memref<8x32xf32, #tpu.memory_space<vmem>>, vector<8x32xf32>,
    } else {
    }
    %c0 = arith.constant 0 : index
    %c0_1 = arith.constant 0 : index
    %3 = vector.load %arg1[%c0, %c0_1] : memref<8x1536xbf16, #tpu.memory_space<vmem>>, vector<8x1536xbf16>
    %c0_2 = arith.constant 0 : index
    %c0_3 = arith.constant 0 : index
    %4 = vector.load %arg2[%c0_2, %c0_3] : memref<1536x128xbf16, #tpu.memory_space<vmem>>, vector<1536x128xbf16>
    %cst = arith.constant dense<0.000000e+00> : vector<8x128xf32>
    %5 = tpu.matmul %3, %4, %cst {dimension_numbers = #tpu.dot_dimension_numbers<[1], [0], [0], [1], [0, 0, 1, 1], [], []>} : vector<8x1536xbf16>, vector<1536x128xbf16>, vector<8x128xf32> -> vector<8x128xf32>
    %c0_4 = arith.constant 0 : index
    %c0_5 = arith.constant 0 : index
    %6 = vector.load %arg3[%c0_4, %c0_5] : memref<1x128xf32, #tpu.memory_space<vmem>>, vector<1x128xf32>
    %7 = vector.broadcast %6 : vector<1x128xf32> to vector<8x128xf32>
    %8 = arith.addf %5, %7 : vector<8x128xf32>
    %cst_6 = arith.constant 0.000000e+00 : f32
    %9 = vector.broadcast %cst_6 : f32 to vector<8x128xf32>
    %10 = arith.maximumf %8, %9 : vector<8x128xf32>
    %c0_7 = arith.constant 0 : index
    %c0_8 = arith.constant 0 : index
    %11 = vector.load %arg7[%c0_7, %c0_8] : memref<8x32xf32, #tpu.memory_space<vmem>>, vector<8x32xf32>
    %12 = arith.truncf %10 : vector<8x128xf32> to vector<8x128xbf16>
    %c0_9 = arith.constant 0 : index
    %c0_10 = arith.constant 0 : index
    %13 = vector.load %arg4[%c0_9, %c0_10] : memref<128x32xbf16, #tpu.memory_space<vmem>>, vector<128x32xbf16>
    %cst_11 = arith.constant dense<0.000000e+00> : vector<8x32xf32>
    %14 = tpu.matmul %12, %13, %cst_11 {dimension_numbers = #tpu.dot_dimension_numbers<[1], [0], [0], [1], [0, 0, 1, 1], [], []>} : vector<8x128xbf16>, vector<128x32xbf16>, vector<8x32xf32> -> vector<8x32xf32>
    %15 = arith.addf %11, %14 : vector<8x32xf32>
    %c0_12 = arith.constant 0 : index
    %c0_13 = arith.constant 0 : index
    %16 = vector.load %arg7[%c0_12, %c0_13] : memref<8x32xf32, #tpu.memory_space<vmem>>, vector<8x32xf32>
    tpu.vector_store %arg7[%c0_12, %c0_13], %15 {strides = array<i32>} : memref<8x32xf32, #tpu.memory_space<vmem>>, vector<8x32xf32>,
    %c3_i32 = arith.constant 3 : i32
    %17 = arith.cmpi eq, %arg0, %c3_i32 : i32
    %18 = arith.extui %17 : i1 to i32
    %c0_i32_14 = arith.constant 0 : i32
    %19 = arith.cmpi ne, %18, %c0_i32_14 : i32
    scf.if %19 {
      %c0_15 = arith.constant 0 : index
      %c0_16 = arith.constant 0 : index
      %20 = vector.load %arg7[%c0_15, %c0_16] : memref<8x32xf32, #tpu.memory_space<vmem>>, vector<8x32xf32>
      %c0_17 = arith.constant 0 : index
      %c0_18 = arith.constant 0 : index
      %21 = vector.load %arg5[%c0_17, %c0_18] : memref<1x32xf32, #tpu.memory_space<vmem>>, vector<1x32xf32>
      %22 = vector.broadcast %21 : vector<1x32xf32> to vector<8x32xf32>
      %23 = arith.addf %20, %22 : vector<8x32xf32>
      %c0_19 = arith.constant 0 : index
      %c0_20 = arith.constant 0 : index
      %24 = vector.load %arg6[%c0_19, %c0_20] : memref<8x32xf32, #tpu.memory_space<vmem>>, vector<8x32xf32>
      tpu.vector_store %arg6[%c0_19, %c0_20], %23 {strides = array<i32>} : memref<8x32xf32, #tpu.memory_space<vmem>>, vector<8x32xf32>,
    } else {
    }
    return
  }
  func.func @transform_0(%arg0: i32) -> (i32, i32) {
    %c0_i32 = arith.constant 0 : i32
    %c0_i32_0 = arith.constant 0 : i32
    %c0_i32_1 = arith.constant 0 : i32
    return %c0_i32, %c0_i32_0 : i32, i32
  }
  func.func @transform_1(%arg0: i32) -> (i32, i32) {
    %c0_i32 = arith.constant 0 : i32
    %c0_i32_0 = arith.constant 0 : i32
    return %c0_i32, %arg0 : i32, i32
  }
  func.func @transform_2(%arg0: i32) -> (i32, i32) {
    %c0_i32 = arith.constant 0 : i32
    %c0_i32_0 = arith.constant 0 : i32
    return %c0_i32, %arg0 : i32, i32
  }
  func.func @transform_3(%arg0: i32) -> (i32, i32) {
    %c0_i32 = arith.constant 0 : i32
    %c0_i32_0 = arith.constant 0 : i32
    return %arg0, %c0_i32 : i32, i32
  }
  func.func @transform_4(%arg0: i32) -> (i32, i32) {
    %c0_i32 = arith.constant 0 : i32
    %c0_i32_0 = arith.constant 0 : i32
    %c0_i32_1 = arith.constant 0 : i32
    return %c0_i32, %c0_i32_0 : i32, i32
  }
  func.func @transform_5(%arg0: i32) -> (i32, i32) {
    %c0_i32 = arith.constant 0 : i32
    %c0_i32_0 = arith.constant 0 : i32
    %c0_i32_1 = arith.constant 0 : i32
    return %c0_i32, %c0_i32_0 : i32, i32
  }
}

</mosaic_0001>

<llo_original>
// kernel: drug_mixedfp_forward.1
$region0: #{drug_mixedfp_forward.1}
  #allocation0 [shape = 'u32[]', space=smem, size = 0x4, offset = 0x4, fixed_abs, tag = 'smem constant byte address 0x4 - core index']
  #allocation1 [shape = 'u32[144,128]{1,0:T(1,128)}', space=vmem, size = 0x12000, scoped, tag = 'internal scratch']
  #allocation2 [shape = 'f32[8,32]{1,0:T(8,128)}', space=vmem, size = 0x1000, scoped, tag = 'scratch operand']
  %s0 = inlined_call_operand.vmem [shape: bf16[8,1536], index: 0, kind: input, shape index: {}]
  %s1 = inlined_call_operand.vmem [shape: bf16[1536,512], index: 1, kind: input, shape index: {}]
  %s2 = inlined_call_operand.vmem [shape: f32[1,512], index: 2, kind: input, shape index: {}]
  %s3 = inlined_call_operand.vmem [shape: bf16[512,32], index: 3, kind: input, shape index: {}]
  %s4 = inlined_call_operand.vmem [shape: f32[1,32], index: 4, kind: input, shape index: {}]
  %s5 = inlined_call_operand.hbm [shape: f32[8,32], index: 5, kind: output, shape index: {}]
  %s6 = sld [smem:[#allocation0]]
  $region102: #{drug_mixedfp_forward.1} parent=0
    _
  %s8 = ssub.s32 1, %s6
  %s9 = scalar_select 0, %s8, %s6
  $region1: #{drug_mixedfp_forward.1} parent=0
    #allocation3 [shape = 'u8[786432]{0}', space=vmem, size = 0xc0000, scoped, tag = 'input window, operand 1']
    #allocation4 [shape = 'u8[4096]{0}', space=vmem, size = 0x1000, scoped, tag = 'output window, operand 0, single buffered']
    #allocation5 [shape = 's32[2]{0}', space=sflag, size = 0x8, scoped, tag = 'scoped memory for drug_mixedfp_forward.1']
    %10 = vsyncpa [#allocation5], 0
    loop: start=0, step=1, limit=6
    $region2: #{drug_mixedfp_forward.1} parent=1 // loop_pre_header
      _
    $region3: #{drug_mixedfp_forward.1} parent=1 // loop_header
      %s12 = sphi 0, %s16
      %p13 = scmp.ge.s32.totalorder %s12, 6
      %s20 = sphi 0, %s20
      %s22 = sphi 0, %s20
      %s23 = sphi 0, %s22
      %s37 = sphi 0, %s23
      %s43 = sphi 0, %s45
      %s46 = sphi 0, %s43
      %s47 = sphi 0, %s46
      %s63 = sphi 0, %s47
      %s69 = sphi 0, %s71
      %s72 = sphi 0, %s69
      %s73 = sphi 0, %s72
      %s89 = sphi 0, %s73
      %s95 = sphi 0, %s97
      %s98 = sphi 0, %s95
      %s99 = sphi 0, %s98
      %s115 = sphi 0, %s99
      %s119 = sphi 0, %s119
      %s121 = sphi 0, %s119
      %s122 = sphi 0, %s121
      %s136 = sphi 0, %s122
      %s140 = sphi 0, %s140
      %s142 = sphi 0, %s140
      %s143 = sphi 0, %s142
      %s157 = sphi 0, %s143
    $region4: #{drug_mixedfp_forward.1} parent=1 // loop_header_branch
      %15 = sbr.rel (%p13) target = $region8
    $region5: #{drug_mixedfp_forward.1} parent=1 // loop_body
      %s17 = ssub.s32 %s12, 1
      %s18 = ssub.s32 %s12, 2
      %s19 = sadd.s32 %s12, 1
      %s21 = sadd.s32 %s20, 1
      %p24 = scmp.eq.s32.totalorder %s12, 3
      %p25 = scmp.ne.s32.totalorder %s20, %s22
      %p26 = scmp.eq.s32.totalorder %s12, 0
      %p27 = por %p25, %p26
      %p28 = scmp.ne.s32.totalorder %s20, %s22
      %p29 = scmp.eq.s32.totalorder %s17, 3
      %p30 = por %p28, %p29
      %p31 = scmp.ne.s32.totalorder %s22, %s23
      %p32 = scmp.eq.s32.totalorder %s17, 0
      %p33 = por %p31, %p32
      %p34 = scmp.ne.s32.totalorder %s22, %s23
      %p35 = scmp.eq.s32.totalorder %s18, 3
      %p36 = por %p34, %p35
      %p38 = scmp.ne.s32.totalorder %s23, %s37
      %p39 = scmp.eq.s32.totalorder %s18, 0
      %p40 = por %p38, %p39
      %s41 = ssub.s32 %s12, %s19
      %p42 = scmp.eq.s32.totalorder %s41, 0
      %s44 = sadd.s32 %s43, 1
      %s45 = scalar_select %p42, %s43, %s44
      %p48 = pneg %p42
      %p49 = scmp.eq.s32.totalorder %s12, 3
      %p50 = por %p48, %p49
      %p51 = scmp.ne.s32.totalorder %s43, %s46
      %p52 = scmp.eq.s32.totalorder %s12, 0
      %p53 = por %p51, %p52
      %p54 = scmp.ne.s32.totalorder %s43, %s46
      %p55 = scmp.eq.s32.totalorder %s17, 3
      %p56 = por %p54, %p55
      %p57 = scmp.ne.s32.totalorder %s46, %s47
      %p58 = scmp.eq.s32.totalorder %s17, 0
      %p59 = por %p57, %p58
      %p60 = scmp.ne.s32.totalorder %s46, %s47
      %p61 = scmp.eq.s32.totalorder %s18, 3
      %p62 = por %p60, %p61
      %p64 = scmp.ne.s32.totalorder %s47, %s63
      %p65 = scmp.eq.s32.totalorder %s18, 0
      %p66 = por %p64, %p65
      %s67 = ssub.s32 %s12, %s19
      %p68 = scmp.eq.s32.totalorder %s67, 0
      %s70 = sadd.s32 %s69, 1
      %s71 = scalar_select %p68, %s69, %s70
      %p74 = pneg %p68
      %p75 = scmp.eq.s32.totalorder %s12, 3
      %p76 = por %p74, %p75
      %p77 = scmp.ne.s32.totalorder %s69, %s72
      %p78 = scmp.eq.s32.totalorder %s12, 0
      %p79 = por %p77, %p78
      %p80 = scmp.ne.s32.totalorder %s69, %s72
      %p81 = scmp.eq.s32.totalorder %s17, 3
      %p82 = por %p80, %p81
      %p83 = scmp.ne.s32.totalorder %s72, %s73
      %p84 = scmp.eq.s32.totalorder %s17, 0
      %p85 = por %p83, %p84
      %p86 = scmp.ne.s32.totalorder %s72, %s73
      %p87 = scmp.eq.s32.totalorder %s18, 3
      %p88 = por %p86, %p87
      %p90 = scmp.ne.s32.totalorder %s73, %s89
      %p91 = scmp.eq.s32.totalorder %s18, 0
      %p92 = por %p90, %p91
      %s93 = ssub.s32 %s12, %s19
      %p94 = scmp.eq.s32.totalorder %s93, 0
      %s96 = sadd.s32 %s95, 1
      %s97 = scalar_select %p94, %s95, %s96
      %p100 = pneg %p94
      %p101 = scmp.eq.s32.totalorder %s12, 3
      %p102 = por %p100, %p101
      %p103 = scmp.ne.s32.totalorder %s95, %s98
      %p104 = scmp.eq.s32.totalorder %s12, 0
      %p105 = por %p103, %p104
      %p106 = scmp.ne.s32.totalorder %s95, %s98
      %p107 = scmp.eq.s32.totalorder %s17, 3
      %p108 = por %p106, %p107
      %p109 = scmp.ne.s32.totalorder %s98, %s99
      %p110 = scmp.eq.s32.totalorder %s17, 0
      %p111 = por %p109, %p110
      %p112 = scmp.ne.s32.totalorder %s98, %s99
      %p113 = scmp.eq.s32.totalorder %s18, 3
      %p114 = por %p112, %p113
      %p116 = scmp.ne.s32.totalorder %s99, %s115
      %p117 = scmp.eq.s32.totalorder %s18, 0
      %p118 = por %p116, %p117
      %s120 = sadd.s32 %s119, 1
      %p123 = scmp.eq.s32.totalorder %s12, 3
      %p124 = scmp.ne.s32.totalorder %s119, %s121
      %p125 = scmp.eq.s32.totalorder %s12, 0
      %p126 = por %p124, %p125
      %p127 = scmp.ne.s32.totalorder %s119, %s121
      %p128 = scmp.eq.s32.totalorder %s17, 3
      %p129 = por %p127, %p128
      %p130 = scmp.ne.s32.totalorder %s121, %s122
      %p131 = scmp.eq.s32.totalorder %s17, 0
      %p132 = por %p130, %p131
      %p133 = scmp.ne.s32.totalorder %s121, %s122
      %p134 = scmp.eq.s32.totalorder %s18, 3
      %p135 = por %p133, %p134
      %p137 = scmp.ne.s32.totalorder %s122, %s136
      %p138 = scmp.eq.s32.totalorder %s18, 0
      %p139 = por %p137, %p138
      %s141 = sadd.s32 %s140, 1
      %p144 = scmp.eq.s32.totalorder %s12, 3
      %p145 = scmp.ne.s32.totalorder %s140, %s142
      %p146 = scmp.eq.s32.totalorder %s12, 0
      %p147 = por %p145, %p146
      %p148 = scmp.ne.s32.totalorder %s140, %s142
      %p149 = scmp.eq.s32.totalorder %s17, 3
      %p150 = por %p148, %p149
      %p151 = scmp.ne.s32.totalorder %s142, %s143
      %p152 = scmp.eq.s32.totalorder %s17, 0
      %p153 = por %p151, %p152
      %p154 = scmp.ne.s32.totalorder %s142, %s143
      %p155 = scmp.eq.s32.totalorder %s18, 3
      %p156 = por %p154, %p155
      %p158 = scmp.ne.s32.totalorder %s143, %s157
      %p159 = scmp.eq.s32.totalorder %s18, 0
      %p160 = por %p158, %p159
      %p161 = scmp.le.s32.totalorder 1, %s12
      %p162 = scmp.lt.s32.totalorder %s12, 5
      %p163 = pnand %p161, %p162
      %p164 = pneg %p163
      // Predicated region
      $region9: #{drug_mixedfp_forward.1} parent=5 // pred_check
        _
      $region10: #{drug_mixedfp_forward.1} parent=5 // pred_check_branch
        %166 = sbr.rel (%p163) target = $region12
      $region11: #{drug_mixedfp_forward.1} parent=5 // pred_region
        %s167 = ssub.s32 %s12, 1
        // Predicated region
        $region13: #{drug_mixedfp_forward.1} parent=11 // pred_check
          %p168 = pneg %p33
        $region14: #{drug_mixedfp_forward.1} parent=11 // pred_check_branch
          %170 = sbr.rel (%p168) target = $region16
        $region15: #{drug_mixedfp_forward.1} parent=11 // pred_region
          _
        $region16: #{drug_mixedfp_forward.1} parent=11 // pred_fallthru
          _
        // Predicated region
        $region17: #{drug_mixedfp_forward.1} parent=11 // pred_check
          %p171 = pneg %p132
        $region18: #{drug_mixedfp_forward.1} parent=11 // pred_check_branch
          %173 = sbr.rel (%p171) target = $region20
        $region19: #{drug_mixedfp_forward.1} parent=11 // pred_region
          _
        $region20: #{drug_mixedfp_forward.1} parent=11 // pred_fallthru
          _
      $region12: #{drug_mixedfp_forward.1} parent=5 // pred_fallthru
        _
      %p174 = scmp.lt.s32.totalorder %s12, 4
      // Predicated region
      $region21: #{drug_mixedfp_forward.1} parent=5 // pred_check
        %p175 = pneg %p174
      $region22: #{drug_mixedfp_forward.1} parent=5 // pred_check_branch
        %177 = sbr.rel (%p175) target = $region24
      $region23: #{drug_mixedfp_forward.1} parent=5 // pred_region
        // Predicated region
        $region25: #{drug_mixedfp_forward.1} parent=23 // pred_check
          %p178 = pneg %p53
        $region26: #{drug_mixedfp_forward.1} parent=23 // pred_check_branch
          %180 = sbr.rel (%p178) target = $region28
        $region27: #{drug_mixedfp_forward.1} parent=23 // pred_region
          %s181 = sand.u32 %s43, 1
          %s182 = sand.u32 %s43, 1
          %s183 = smul.addr %s182, 768
          %s184 = scalar_lea.vmem [#allocation3], %s183
          %s185 = smul.addr %s12, 4
          %s186 = scalar_lea.vmem %s1, %s185
          // Predicated region
          $region29: #{drug_mixedfp_forward.1} parent=27 // pred_check
            _
          $region30: #{drug_mixedfp_forward.1} parent=27 // pred_check_branch
            %188 = sbr.rel (0) target = $region32
          $region31: #{drug_mixedfp_forward.1} parent=27 // pred_region
            // Predicated region
            $region33: #{drug_mixedfp_forward.1} parent=31 // pred_check
              _
            $region34: #{drug_mixedfp_forward.1} parent=31 // pred_check_branch
              %190 = sbr.rel target = $region36
            $region35: #{drug_mixedfp_forward.1} parent=31 // pred_region
              // Predicated region
              $region48: #{drug_mixedfp_forward.1} parent=35 // pred_check
                _
              $region49: #{drug_mixedfp_forward.1} parent=35 // pred_check_branch
                %587 = sbr.rel (0) target = $region51
              $region50: #{drug_mixedfp_forward.1} parent=35 // pred_region
                loop: start=0, step=1, limit=1
                $region52: #{drug_mixedfp_forward.1} parent=50 // loop_pre_header
                  _
                $region53: #{drug_mixedfp_forward.1} parent=50 // loop_header
                  %s589 = sphi 0, %s593
                  %p590 = scmp.ge.s32.totalorder %s589, 1
                  %s594 = sphi %s186, %s186
                  %s595 = sphi %s184, %s184
                $region54: #{drug_mixedfp_forward.1} parent=50 // loop_header_branch
                  %592 = sbr.rel (%p590) target = $region58
                $region55: #{drug_mixedfp_forward.1} parent=50 // loop_body
                  _
                $region56: #{drug_mixedfp_forward.1} parent=50 // loop_footer
                  %s593 = sadd.s32 1, %s589
                $region57: #{drug_mixedfp_forward.1} parent=50 // loop_footer_branch
                  %588 = sbr.rel target = $region53
                $region58: #{drug_mixedfp_forward.1} parent=50 // loop_exit
                  _
                loop: start=0, step=1, limit=1
                $region59: #{drug_mixedfp_forward.1} parent=50 // loop_pre_header
                  _
                $region60: #{drug_mixedfp_forward.1} parent=50 // loop_header
                  %s598 = sphi 0, %s602
                  %p599 = scmp.ge.s32.totalorder %s598, 1
                  %s603 = sphi %s186, %s186
                  %s604 = sphi %s184, %s184
                $region61: #{drug_mixedfp_forward.1} parent=50 // loop_header_branch
                  %601 = sbr.rel (%p599) target = $region65
                $region62: #{drug_mixedfp_forward.1} parent=50 // loop_body
                  %v605 = vld [vmem:[%s603] sm:$0xf]
                  %606 = vst [vmem:[%s604] sm:$0xf] %v605
                  %v607 = vld [vmem:[%s603 + $0x10] sm:$0xf]
                  %608 = vst [vmem:[%s604 + $0x4] sm:$0xf] %v607
                  %v609 = vld [vmem:[%s603 + $0x20] sm:$0xf]
                  %610 = vst [vmem:[%s604 + $0x8] sm:$0xf] %v609
                  %v611 = vld [vmem:[%s603 + $0x30] sm:$0xf]
                  %612 = vst [vmem:[%s604 + $0xc] sm:$0xf] %v611
                  %v613 = vld [vmem:[%s603 + $0x40] sm:$0xf]
                  %614 = vst [vmem:[%s604 + $0x10] sm:$0xf] %v613
                  %v615 = vld [vmem:[%s603 + $0x50] sm:$0xf]
                  %616 = vst [vmem:[%s604 + $0x14] sm:$0xf] %v615
                  %v617 = vld [vmem:[%s603 + $0x60] sm:$0xf]
                  %618 = vst [vmem:[%s604 + $0x18] sm:$0xf] %v617
                  %v619 = vld [vmem:[%s603 + $0x70] sm:$0xf]
                  %620 = vst [vmem:[%s604 + $0x1c] sm:$0xf] %v619
                  %v621 = vld [vmem:[%s603 + $0x80] sm:$0xf]
                  %622 = vst [vmem:[%s604 + $0x20] sm:$0xf] %v621
                  %v623 = vld [vmem:[%s603 + $0x90] sm:$0xf]
                  %624 = vst [vmem:[%s604 + $0x24] sm:$0xf] %v623
                  %v625 = vld [vmem:[%s603 + $0xa0] sm:$0xf]
                  %626 = vst [vmem:[%s604 + $0x28] sm:$0xf] %v625
                  %v627 = vld [vmem:[%s603 + $0xb0] sm:$0xf]
                  %628 = vst [vmem:[%s604 + $0x2c] sm:$0xf] %v627
                  %v629 = vld [vmem:[%s603 + $0xc0] sm:$0xf]
                  %630 = vst [vmem:[%s604 + $0x30] sm:$0xf] %v629
                  %v631 = vld [vmem:[%s603 + $0xd0] sm:$0xf]
                  %632 = vst [vmem:[%s604 + $0x34] sm:$0xf] %v631
                  %v633 = vld [vmem:[%s603 + $0xe0] sm:$0xf]
                  %634 = vst [vmem:[%s604 + $0x38] sm:$0xf] %v633
                  %v635 = vld [vmem:[%s603 + $0xf0] sm:$0xf]
                  %636 = vst [vmem:[%s604 + $0x3c] sm:$0xf] %v635
                  %v637 = vld [vmem:[%s603 + $0x100] sm:$0xf]
                  %638 = vst [vmem:[%s604 + $0x40] sm:$0xf] %v637
                  %v639 = vld [vmem:[%s603 + $0x110] sm:$0xf]
                  %640 = vst [vmem:[%s604 + $0x44] sm:$0xf] %v639
                  %v641 = vld [vmem:[%s603 + $0x120] sm:$0xf]
                  %642 = vst [vmem:[%s604 + $0x48] sm:$0xf] %v641
                  %v643 = vld [vmem:[%s603 + $0x130] sm:$0xf]
                  %644 = vst [vmem:[%s604 + $0x4c] sm:$0xf] %v643
                  %v645 = vld [vmem:[%s603 + $0x140] sm:$0xf]
                  %646 = vst [vmem:[%s604 + $0x50] sm:$0xf] %v645
                  %v647 = vld [vmem:[%s603 + $0x150] sm:$0xf]
                  %648 = vst [vmem:[%s604 + $0x54] sm:$0xf] %v647
                  %v649 = vld [vmem:[%s603 + $0x160] sm:$0xf]
                  %650 = vst [vmem:[%s604 + $0x58] sm:$0xf] %v649
                  %v651 = vld [vmem:[%s603 + $0x170] sm:$0xf]
                  %652 = vst [vmem:[%s604 + $0x5c] sm:$0xf] %v651
                  %v653 = vld [vmem:[%s603 + $0x180] sm:$0xf]
                  %654 = vst [vmem:[%s604 + $0x60] sm:$0xf] %v653
                  %v655 = vld [vmem:[%s603 + $0x190] sm:$0xf]
                  %656 = vst [vmem:[%s604 + $0x64] sm:$0xf] %v655
                  %v657 = vld [vmem:[%s603 + $0x1a0] sm:$0xf]
                  %658 = vst [vmem:[%s604 + $0x68] sm:$0xf] %v657
                  %v659 = vld [vmem:[%s603 + $0x1b0] sm:$0xf]
                  %660 = vst [vmem:[%s604 + $0x6c] sm:$0xf] %v659
                  %v661 = vld [vmem:[%s603 + $0x1c0] sm:$0xf]
                  %662 = vst [vmem:[%s604 + $0x70] sm:$0xf] %v661
                  %v663 = vld [vmem:[%s603 + $0x1d0] sm:$0xf]
                  %664 = vst [vmem:[%s604 + $0x74] sm:$0xf] %v663
                  %v665 = vld [vmem:[%s603 + $0x1e0] sm:$0xf]
                  %666 = vst [vmem:[%s604 + $0x78] sm:$0xf] %v665
                  %v667 = vld [vmem:[%s603 + $0x1f0] sm:$0xf]
                  %668 = vst [vmem:[%s604 + $0x7c] sm:$0xf] %v667
                  %v669 = vld [vmem:[%s603 + $0x200] sm:$0xf]
                  %670 = vst [vmem:[%s604 + $0x80] sm:$0xf] %v669
                  %v671 = vld [vmem:[%s603 + $0x210] sm:$0xf]
                  %672 = vst [vmem:[%s604 + $0x84] sm:$0xf] %v671
                  %v673 = vld [vmem:[%s603 + $0x220] sm:$0xf]
                  %674 = vst [vmem:[%s604 + $0x88] sm:$0xf] %v673
                  %v675 = vld [vmem:[%s603 + $0x230] sm:$0xf]
                  %676 = vst [vmem:[%s604 + $0x8c] sm:$0xf] %v675
                  %v677 = vld [vmem:[%s603 + $0x240] sm:$0xf]
                  %678 = vst [vmem:[%s604 + $0x90] sm:$0xf] %v677
                  %v679 = vld [vmem:[%s603 + $0x250] sm:$0xf]
                  %680 = vst [vmem:[%s604 + $0x94] sm:$0xf] %v679
                  %v681 = vld [vmem:[%s603 + $0x260] sm:$0xf]
                  %682 = vst [vmem:[%s604 + $0x98] sm:$0xf] %v681
                  %v683 = vld [vmem:[%s603 + $0x270] sm:$0xf]
                  %684 = vst [vmem:[%s604 + $0x9c] sm:$0xf] %v683
                  %v685 = vld [vmem:[%s603 + $0x280] sm:$0xf]
                  %686 = vst [vmem:[%s604 + $0xa0] sm:$0xf] %v685
                  %v687 = vld [vmem:[%s603 + $0x290] sm:$0xf]
                  %688 = vst [vmem:[%s604 + $0xa4] sm:$0xf] %v687
                  %v689 = vld [vmem:[%s603 + $0x2a0] sm:$0xf]
                  %690 = vst [vmem:[%s604 + $0xa8] sm:$0xf] %v689
                  %v691 = vld [vmem:[%s603 + $0x2b0] sm:$0xf]
                  %692 = vst [vmem:[%s604 + $0xac] sm:$0xf] %v691
                  %v693 = vld [vmem:[%s603 + $0x2c0] sm:$0xf]
                  %694 = vst [vmem:[%s604 + $0xb0] sm:$0xf] %v693
                  %v695 = vld [vmem:[%s603 + $0x2d0] sm:$0xf]
                  %696 = vst [vmem:[%s604 + $0xb4] sm:$0xf] %v695
                  %v697 = vld [vmem:[%s603 + $0x2e0] sm:$0xf]
                  %698 = vst [vmem:[%s604 + $0xb8] sm:$0xf] %v697
                  %v699 = vld [vmem:[%s603 + $0x2f0] sm:$0xf]
                  %700 = vst [vmem:[%s604 + $0xbc] sm:$0xf] %v699
                  %v701 = vld [vmem:[%s603 + $0x300] sm:$0xf]
                  %702 = vst [vmem:[%s604 + $0xc0] sm:$0xf] %v701
                  %v703 = vld [vmem:[%s603 + $0x310] sm:$0xf]
                  %704 = vst [vmem:[%s604 + $0xc4] sm:$0xf] %v703
                  %v705 = vld [vmem:[%s603 + $0x320] sm:$0xf]
                  %706 = vst [vmem:[%s604 + $0xc8] sm:$0xf] %v705
                  %v707 = vld [vmem:[%s603 + $0x330] sm:$0xf]
                  %708 = vst [vmem:[%s604 + $0xcc] sm:$0xf] %v707
                  %v709 = vld [vmem:[%s603 + $0x340] sm:$0xf]
                  %710 = vst [vmem:[%s604 + $0xd0] sm:$0xf] %v709
                  %v711 = vld [vmem:[%s603 + $0x350] sm:$0xf]
                  %712 = vst [vmem:[%s604 + $0xd4] sm:$0xf] %v711
                  %v713 = vld [vmem:[%s603 + $0x360] sm:$0xf]
                  %714 = vst [vmem:[%s604 + $0xd8] sm:$0xf] %v713
                  %v715 = vld [vmem:[%s603 + $0x370] sm:$0xf]
                  %716 = vst [vmem:[%s604 + $0xdc] sm:$0xf] %v715
                  %v717 = vld [vmem:[%s603 + $0x380] sm:$0xf]
                  %718 = vst [vmem:[%s604 + $0xe0] sm:$0xf] %v717
                  %v719 = vld [vmem:[%s603 + $0x390] sm:$0xf]
                  %720 = vst [vmem:[%s604 + $0xe4] sm:$0xf] %v719
                  %v721 = vld [vmem:[%s603 + $0x3a0] sm:$0xf]
                  %722 = vst [vmem:[%s604 + $0xe8] sm:$0xf] %v721
                  %v723 = vld [vmem:[%s603 + $0x3b0] sm:$0xf]
                  %724 = vst [vmem:[%s604 + $0xec] sm:$0xf] %v723
                  %v725 = vld [vmem:[%s603 + $0x3c0] sm:$0xf]
                  %726 = vst [vmem:[%s604 + $0xf0] sm:$0xf] %v725
                  %v727 = vld [vmem:[%s603 + $0x3d0] sm:$0xf]
                  %728 = vst [vmem:[%s604 + $0xf4] sm:$0xf] %v727
                  %v729 = vld [vmem:[%s603 + $0x3e0] sm:$0xf]
                  %730 = vst [vmem:[%s604 + $0xf8] sm:$0xf] %v729
                  %v731 = vld [vmem:[%s603 + $0x3f0] sm:$0xf]
                  %732 = vst [vmem:[%s604 + $0xfc] sm:$0xf] %v731
                  %v733 = vld [vmem:[%s603 + $0x400] sm:$0xf]
                  %734 = vst [vmem:[%s604 + $0x100] sm:$0xf] %v733
                  %v735 = vld [vmem:[%s603 + $0x410] sm:$0xf]
                  %736 = vst [vmem:[%s604 + $0x104] sm:$0xf] %v735
                  %v737 = vld [vmem:[%s603 + $0x420] sm:$0xf]
                  %738 = vst [vmem:[%s604 + $0x108] sm:$0xf] %v737
                  %v739 = vld [vmem:[%s603 + $0x430] sm:$0xf]
                  %740 = vst [vmem:[%s604 + $0x10c] sm:$0xf] %v739
                  %v741 = vld [vmem:[%s603 + $0x440] sm:$0xf]
                  %742 = vst [vmem:[%s604 + $0x110] sm:$0xf] %v741
                  %v743 = vld [vmem:[%s603 + $0x450] sm:$0xf]
                  %744 = vst [vmem:[%s604 + $0x114] sm:$0xf] %v743
                  %v745 = vld [vmem:[%s603 + $0x460] sm:$0xf]
                  %746 = vst [vmem:[%s604 + $0x118] sm:$0xf] %v745
                  %v747 = vld [vmem:[%s603 + $0x470] sm:$0xf]
                  %748 = vst [vmem:[%s604 + $0x11c] sm:$0xf] %v747
                  %v749 = vld [vmem:[%s603 + $0x480] sm:$0xf]
                  %750 = vst [vmem:[%s604 + $0x120] sm:$0xf] %v749
                  %v751 = vld [vmem:[%s603 + $0x490] sm:$0xf]
                  %752 = vst [vmem:[%s604 + $0x124] sm:$0xf] %v751
                  %v753 = vld [vmem:[%s603 + $0x4a0] sm:$0xf]
                  %754 = vst [vmem:[%s604 + $0x128] sm:$0xf] %v753
                  %v755 = vld [vmem:[%s603 + $0x4b0] sm:$0xf]
                  %756 = vst [vmem:[%s604 + $0x12c] sm:$0xf] %v755
                  %v757 = vld [vmem:[%s603 + $0x4c0] sm:$0xf]
                  %758 = vst [vmem:[%s604 + $0x130] sm:$0xf] %v757
                  %v759 = vld [vmem:[%s603 + $0x4d0] sm:$0xf]
                  %760 = vst [vmem:[%s604 + $0x134] sm:$0xf] %v759
                  %v761 = vld [vmem:[%s603 + $0x4e0] sm:$0xf]
                  %762 = vst [vmem:[%s604 + $0x138] sm:$0xf] %v761
                  %v763 = vld [vmem:[%s603 + $0x4f0] sm:$0xf]
                  %764 = vst [vmem:[%s604 + $0x13c] sm:$0xf] %v763
                  %v765 = vld [vmem:[%s603 + $0x500] sm:$0xf]
                  %766 = vst [vmem:[%s604 + $0x140] sm:$0xf] %v765
                  %v767 = vld [vmem:[%s603 + $0x510] sm:$0xf]
                  %768 = vst [vmem:[%s604 + $0x144] sm:$0xf] %v767
                  %v769 = vld [vmem:[%s603 + $0x520] sm:$0xf]
                  %770 = vst [vmem:[%s604 + $0x148] sm:$0xf] %v769
                  %v771 = vld [vmem:[%s603 + $0x530] sm:$0xf]
                  %772 = vst [vmem:[%s604 + $0x14c] sm:$0xf] %v771
                  %v773 = vld [vmem:[%s603 + $0x540] sm:$0xf]
                  %774 = vst [vmem:[%s604 + $0x150] sm:$0xf] %v773
                  %v775 = vld [vmem:[%s603 + $0x550] sm:$0xf]
                  %776 = vst [vmem:[%s604 + $0x154] sm:$0xf] %v775
                  %v777 = vld [vmem:[%s603 + $0x560] sm:$0xf]
                  %778 = vst [vmem:[%s604 + $0x158] sm:$0xf] %v777
                  %v779 = vld [vmem:[%s603 + $0x570] sm:$0xf]
                  %780 = vst [vmem:[%s604 + $0x15c] sm:$0xf] %v779
                  %v781 = vld [vmem:[%s603 + $0x580] sm:$0xf]
                  %782 = vst [vmem:[%s604 + $0x160] sm:$0xf] %v781
                  %v783 = vld [vmem:[%s603 + $0x590] sm:$0xf]
                  %784 = vst [vmem:[%s604 + $0x164] sm:$0xf] %v783
                  %v785 = vld [vmem:[%s603 + $0x5a0] sm:$0xf]
                  %786 = vst [vmem:[%s604 + $0x168] sm:$0xf] %v785
                  %v787 = vld [vmem:[%s603 + $0x5b0] sm:$0xf]
                  %788 = vst [vmem:[%s604 + $0x16c] sm:$0xf] %v787
                  %v789 = vld [vmem:[%s603 + $0x5c0] sm:$0xf]
                  %790 = vst [vmem:[%s604 + $0x170] sm:$0xf] %v789
                  %v791 = vld [vmem:[%s603 + $0x5d0] sm:$0xf]
                  %792 = vst [vmem:[%s604 + $0x174] sm:$0xf] %v791
                  %v793 = vld [vmem:[%s603 + $0x5e0] sm:$0xf]
                  %794 = vst [vmem:[%s604 + $0x178] sm:$0xf] %v793
                  %v795 = vld [vmem:[%s603 + $0x5f0] sm:$0xf]
                  %796 = vst [vmem:[%s604 + $0x17c] sm:$0xf] %v795
                  %v797 = vld [vmem:[%s603 + $0x600] sm:$0xf]
                  %798 = vst [vmem:[%s604 + $0x180] sm:$0xf] %v797
                  %v799 = vld [vmem:[%s603 + $0x610] sm:$0xf]
                  %800 = vst [vmem:[%s604 + $0x184] sm:$0xf] %v799
                  %v801 = vld [vmem:[%s603 + $0x620] sm:$0xf]
                  %802 = vst [vmem:[%s604 + $0x188] sm:$0xf] %v801
                  %v803 = vld [vmem:[%s603 + $0x630] sm:$0xf]
                  %804 = vst [vmem:[%s604 + $0x18c] sm:$0xf] %v803
                  %v805 = vld [vmem:[%s603 + $0x640] sm:$0xf]
                  %806 = vst [vmem:[%s604 + $0x190] sm:$0xf] %v805
                  %v807 = vld [vmem:[%s603 + $0x650] sm:$0xf]
                  %808 = vst [vmem:[%s604 + $0x194] sm:$0xf] %v807
                  %v809 = vld [vmem:[%s603 + $0x660] sm:$0xf]
                  %810 = vst [vmem:[%s604 + $0x198] sm:$0xf] %v809
                  %v811 = vld [vmem:[%s603 + $0x670] sm:$0xf]
                  %812 = vst [vmem:[%s604 + $0x19c] sm:$0xf] %v811
                  %v813 = vld [vmem:[%s603 + $0x680] sm:$0xf]
                  %814 = vst [vmem:[%s604 + $0x1a0] sm:$0xf] %v813
                  %v815 = vld [vmem:[%s603 + $0x690] sm:$0xf]
                  %816 = vst [vmem:[%s604 + $0x1a4] sm:$0xf] %v815
                  %v817 = vld [vmem:[%s603 + $0x6a0] sm:$0xf]
                  %818 = vst [vmem:[%s604 + $0x1a8] sm:$0xf] %v817
                  %v819 = vld [vmem:[%s603 + $0x6b0] sm:$0xf]
                  %820 = vst [vmem:[%s604 + $0x1ac] sm:$0xf] %v819
                  %v821 = vld [vmem:[%s603 + $0x6c0] sm:$0xf]
                  %822 = vst [vmem:[%s604 + $0x1b0] sm:$0xf] %v821
                  %v823 = vld [vmem:[%s603 + $0x6d0] sm:$0xf]
                  %824 = vst [vmem:[%s604 + $0x1b4] sm:$0xf] %v823
                  %v825 = vld [vmem:[%s603 + $0x6e0] sm:$0xf]
                  %826 = vst [vmem:[%s604 + $0x1b8] sm:$0xf] %v825
                  %v827 = vld [vmem:[%s603 + $0x6f0] sm:$0xf]
                  %828 = vst [vmem:[%s604 + $0x1bc] sm:$0xf] %v827
                  %v829 = vld [vmem:[%s603 + $0x700] sm:$0xf]
                  %830 = vst [vmem:[%s604 + $0x1c0] sm:$0xf] %v829
                  %v831 = vld [vmem:[%s603 + $0x710] sm:$0xf]
                  %832 = vst [vmem:[%s604 + $0x1c4] sm:$0xf] %v831
                  %v833 = vld [vmem:[%s603 + $0x720] sm:$0xf]
                  %834 = vst [vmem:[%s604 + $0x1c8] sm:$0xf] %v833
                  %v835 = vld [vmem:[%s603 + $0x730] sm:$0xf]
                  %836 = vst [vmem:[%s604 + $0x1cc] sm:$0xf] %v835
                  %v837 = vld [vmem:[%s603 + $0x740] sm:$0xf]
                  %838 = vst [vmem:[%s604 + $0x1d0] sm:$0xf] %v837
                  %v839 = vld [vmem:[%s603 + $0x750] sm:$0xf]
                  %840 = vst [vmem:[%s604 + $0x1d4] sm:$0xf] %v839
                  %v841 = vld [vmem:[%s603 + $0x760] sm:$0xf]
                  %842 = vst [vmem:[%s604 + $0x1d8] sm:$0xf] %v841
                  %v843 = vld [vmem:[%s603 + $0x770] sm:$0xf]
                  %844 = vst [vmem:[%s604 + $0x1dc] sm:$0xf] %v843
                  %v845 = vld [vmem:[%s603 + $0x780] sm:$0xf]
                  %846 = vst [vmem:[%s604 + $0x1e0] sm:$0xf] %v845
                  %v847 = vld [vmem:[%s603 + $0x790] sm:$0xf]
                  %848 = vst [vmem:[%s604 + $0x1e4] sm:$0xf] %v847
                  %v849 = vld [vmem:[%s603 + $0x7a0] sm:$0xf]
                  %850 = vst [vmem:[%s604 + $0x1e8] sm:$0xf] %v849
                  %v851 = vld [vmem:[%s603 + $0x7b0] sm:$0xf]
                  %852 = vst [vmem:[%s604 + $0x1ec] sm:$0xf] %v851
                  %v853 = vld [vmem:[%s603 + $0x7c0] sm:$0xf]
                  %854 = vst [vmem:[%s604 + $0x1f0] sm:$0xf] %v853
                  %v855 = vld [vmem:[%s603 + $0x7d0] sm:$0xf]
                  %856 = vst [vmem:[%s604 + $0x1f4] sm:$0xf] %v855
                  %v857 = vld [vmem:[%s603 + $0x7e0] sm:$0xf]
                  %858 = vst [vmem:[%s604 + $0x1f8] sm:$0xf] %v857
                  %v859 = vld [vmem:[%s603 + $0x7f0] sm:$0xf]
                  %860 = vst [vmem:[%s604 + $0x1fc] sm:$0xf] %v859
                  %v861 = vld [vmem:[%s603 + $0x800] sm:$0xf]
                  %862 = vst [vmem:[%s604 + $0x200] sm:$0xf] %v861
                  %v863 = vld [vmem:[%s603 + $0x810] sm:$0xf]
                  %864 = vst [vmem:[%s604 + $0x204] sm:$0xf] %v863
                  %v865 = vld [vmem:[%s603 + $0x820] sm:$0xf]
                  %866 = vst [vmem:[%s604 + $0x208] sm:$0xf] %v865
                  %v867 = vld [vmem:[%s603 + $0x830] sm:$0xf]
                  %868 = vst [vmem:[%s604 + $0x20c] sm:$0xf] %v867
                  %v869 = vld [vmem:[%s603 + $0x840] sm:$0xf]
                  %870 = vst [vmem:[%s604 + $0x210] sm:$0xf] %v869
                  %v871 = vld [vmem:[%s603 + $0x850] sm:$0xf]
                  %872 = vst [vmem:[%s604 + $0x214] sm:$0xf] %v871
                  %v873 = vld [vmem:[%s603 + $0x860] sm:$0xf]
                  %874 = vst [vmem:[%s604 + $0x218] sm:$0xf] %v873
                  %v875 = vld [vmem:[%s603 + $0x870] sm:$0xf]
                  %876 = vst [vmem:[%s604 + $0x21c] sm:$0xf] %v875
                  %v877 = vld [vmem:[%s603 + $0x880] sm:$0xf]
                  %878 = vst [vmem:[%s604 + $0x220] sm:$0xf] %v877
                  %v879 = vld [vmem:[%s603 + $0x890] sm:$0xf]
                  %880 = vst [vmem:[%s604 + $0x224] sm:$0xf] %v879
                  %v881 = vld [vmem:[%s603 + $0x8a0] sm:$0xf]
                  %882 = vst [vmem:[%s604 + $0x228] sm:$0xf] %v881
                  %v883 = vld [vmem:[%s603 + $0x8b0] sm:$0xf]
                  %884 = vst [vmem:[%s604 + $0x22c] sm:$0xf] %v883
                  %v885 = vld [vmem:[%s603 + $0x8c0] sm:$0xf]
                  %886 = vst [vmem:[%s604 + $0x230] sm:$0xf] %v885
                  %v887 = vld [vmem:[%s603 + $0x8d0] sm:$0xf]
                  %888 = vst [vmem:[%s604 + $0x234] sm:$0xf] %v887
                  %v889 = vld [vmem:[%s603 + $0x8e0] sm:$0xf]
                  %890 = vst [vmem:[%s604 + $0x238] sm:$0xf] %v889
                  %v891 = vld [vmem:[%s603 + $0x8f0] sm:$0xf]
                  %892 = vst [vmem:[%s604 + $0x23c] sm:$0xf] %v891
                  %v893 = vld [vmem:[%s603 + $0x900] sm:$0xf]
                  %894 = vst [vmem:[%s604 + $0x240] sm:$0xf] %v893
                  %v895 = vld [vmem:[%s603 + $0x910] sm:$0xf]
                  %896 = vst [vmem:[%s604 + $0x244] sm:$0xf] %v895
                  %v897 = vld [vmem:[%s603 + $0x920] sm:$0xf]
                  %898 = vst [vmem:[%s604 + $0x248] sm:$0xf] %v897
                  %v899 = vld [vmem:[%s603 + $0x930] sm:$0xf]
                  %900 = vst [vmem:[%s604 + $0x24c] sm:$0xf] %v899
                  %v901 = vld [vmem:[%s603 + $0x940] sm:$0xf]
                  %902 = vst [vmem:[%s604 + $0x250] sm:$0xf] %v901
                  %v903 = vld [vmem:[%s603 + $0x950] sm:$0xf]
                  %904 = vst [vmem:[%s604 + $0x254] sm:$0xf] %v903
                  %v905 = vld [vmem:[%s603 + $0x960] sm:$0xf]
                  %906 = vst [vmem:[%s604 + $0x258] sm:$0xf] %v905
                  %v907 = vld [vmem:[%s603 + $0x970] sm:$0xf]
                  %908 = vst [vmem:[%s604 + $0x25c] sm:$0xf] %v907
                  %v909 = vld [vmem:[%s603 + $0x980] sm:$0xf]
                  %910 = vst [vmem:[%s604 + $0x260] sm:$0xf] %v909
                  %v911 = vld [vmem:[%s603 + $0x990] sm:$0xf]
                  %912 = vst [vmem:[%s604 + $0x264] sm:$0xf] %v911
                  %v913 = vld [vmem:[%s603 + $0x9a0] sm:$0xf]
                  %914 = vst [vmem:[%s604 + $0x268] sm:$0xf] %v913
                  %v915 = vld [vmem:[%s603 + $0x9b0] sm:$0xf]
                  %916 = vst [vmem:[%s604 + $0x26c] sm:$0xf] %v915
                  %v917 = vld [vmem:[%s603 + $0x9c0] sm:$0xf]
                  %918 = vst [vmem:[%s604 + $0x270] sm:$0xf] %v917
                  %v919 = vld [vmem:[%s603 + $0x9d0] sm:$0xf]
                  %920 = vst [vmem:[%s604 + $0x274] sm:$0xf] %v919
                  %v921 = vld [vmem:[%s603 + $0x9e0] sm:$0xf]
                  %922 = vst [vmem:[%s604 + $0x278] sm:$0xf] %v921
                  %v923 = vld [vmem:[%s603 + $0x9f0] sm:$0xf]
                  %924 = vst [vmem:[%s604 + $0x27c] sm:$0xf] %v923
                  %v925 = vld [vmem:[%s603 + $0xa00] sm:$0xf]
                  %926 = vst [vmem:[%s604 + $0x280] sm:$0xf] %v925
                  %v927 = vld [vmem:[%s603 + $0xa10] sm:$0xf]
                  %928 = vst [vmem:[%s604 + $0x284] sm:$0xf] %v927
                  %v929 = vld [vmem:[%s603 + $0xa20] sm:$0xf]
                  %930 = vst [vmem:[%s604 + $0x288] sm:$0xf] %v929
                  %v931 = vld [vmem:[%s603 + $0xa30] sm:$0xf]
                  %932 = vst [vmem:[%s604 + $0x28c] sm:$0xf] %v931
                  %v933 = vld [vmem:[%s603 + $0xa40] sm:$0xf]
                  %934 = vst [vmem:[%s604 + $0x290] sm:$0xf] %v933
                  %v935 = vld [vmem:[%s603 + $0xa50] sm:$0xf]
                  %936 = vst [vmem:[%s604 + $0x294] sm:$0xf] %v935
                  %v937 = vld [vmem:[%s603 + $0xa60] sm:$0xf]
                  %938 = vst [vmem:[%s604 + $0x298] sm:$0xf] %v937
                  %v939 = vld [vmem:[%s603 + $0xa70] sm:$0xf]
                  %940 = vst [vmem:[%s604 + $0x29c] sm:$0xf] %v939
                  %v941 = vld [vmem:[%s603 + $0xa80] sm:$0xf]
                  %942 = vst [vmem:[%s604 + $0x2a0] sm:$0xf] %v941
                  %v943 = vld [vmem:[%s603 + $0xa90] sm:$0xf]
                  %944 = vst [vmem:[%s604 + $0x2a4] sm:$0xf] %v943
                  %v945 = vld [vmem:[%s603 + $0xaa0] sm:$0xf]
                  %946 = vst [vmem:[%s604 + $0x2a8] sm:$0xf] %v945
                  %v947 = vld [vmem:[%s603 + $0xab0] sm:$0xf]
                  %948 = vst [vmem:[%s604 + $0x2ac] sm:$0xf] %v947
                  %v949 = vld [vmem:[%s603 + $0xac0] sm:$0xf]
                  %950 = vst [vmem:[%s604 + $0x2b0] sm:$0xf] %v949
                  %v951 = vld [vmem:[%s603 + $0xad0] sm:$0xf]
                  %952 = vst [vmem:[%s604 + $0x2b4] sm:$0xf] %v951
                  %v953 = vld [vmem:[%s603 + $0xae0] sm:$0xf]
                  %954 = vst [vmem:[%s604 + $0x2b8] sm:$0xf] %v953
                  %v955 = vld [vmem:[%s603 + $0xaf0] sm:$0xf]
                  %956 = vst [vmem:[%s604 + $0x2bc] sm:$0xf] %v955
                  %v957 = vld [vmem:[%s603 + $0xb00] sm:$0xf]
                  %958 = vst [vmem:[%s604 + $0x2c0] sm:$0xf] %v957
                  %v959 = vld [vmem:[%s603 + $0xb10] sm:$0xf]
                  %960 = vst [vmem:[%s604 + $0x2c4] sm:$0xf] %v959
                  %v961 = vld [vmem:[%s603 + $0xb20] sm:$0xf]
                  %962 = vst [vmem:[%s604 + $0x2c8] sm:$0xf] %v961
                  %v963 = vld [vmem:[%s603 + $0xb30] sm:$0xf]
                  %964 = vst [vmem:[%s604 + $0x2cc] sm:$0xf] %v963
                  %v965 = vld [vmem:[%s603 + $0xb40] sm:$0xf]
                  %966 = vst [vmem:[%s604 + $0x2d0] sm:$0xf] %v965
                  %v967 = vld [vmem:[%s603 + $0xb50] sm:$0xf]
                  %968 = vst [vmem:[%s604 + $0x2d4] sm:$0xf] %v967
                  %v969 = vld [vmem:[%s603 + $0xb60] sm:$0xf]
                  %970 = vst [vmem:[%s604 + $0x2d8] sm:$0xf] %v969
                  %v971 = vld [vmem:[%s603 + $0xb70] sm:$0xf]
                  %972 = vst [vmem:[%s604 + $0x2dc] sm:$0xf] %v971
                  %v973 = vld [vmem:[%s603 + $0xb80] sm:$0xf]
                  %974 = vst [vmem:[%s604 + $0x2e0] sm:$0xf] %v973
                  %v975 = vld [vmem:[%s603 + $0xb90] sm:$0xf]
                  %976 = vst [vmem:[%s604 + $0x2e4] sm:$0xf] %v975
                  %v977 = vld [vmem:[%s603 + $0xba0] sm:$0xf]
                  %978 = vst [vmem:[%s604 + $0x2e8] sm:$0xf] %v977
                  %v979 = vld [vmem:[%s603 + $0xbb0] sm:$0xf]
                  %980 = vst [vmem:[%s604 + $0x2ec] sm:$0xf] %v979
                  %v981 = vld [vmem:[%s603 + $0xbc0] sm:$0xf]
                  %982 = vst [vmem:[%s604 + $0x2f0] sm:$0xf] %v981
                  %v983 = vld [vmem:[%s603 + $0xbd0] sm:$0xf]
                  %984 = vst [vmem:[%s604 + $0x2f4] sm:$0xf] %v983
                  %v985 = vld [vmem:[%s603 + $0xbe0] sm:$0xf]
                  %986 = vst [vmem:[%s604 + $0x2f8] sm:$0xf] %v985
                  %v987 = vld [vmem:[%s603 + $0xbf0] sm:$0xf]
                  %988 = vst [vmem:[%s604 + $0x2fc] sm:$0xf] %v987
                $region63: #{drug_mixedfp_forward.1} parent=50 // loop_footer
                  %s602 = sadd.s32 1, %s598
                $region64: #{drug_mixedfp_forward.1} parent=50 // loop_footer_branch
                  %597 = sbr.rel target = $region60
                $region65: #{drug_mixedfp_forward.1} parent=50 // loop_exit
                  _
              $region51: #{drug_mixedfp_forward.1} parent=35 // pred_fallthru
                _
            $region36: #{drug_mixedfp_forward.1} parent=31 // pred_fallthru
              _
            // Predicated region
            $region37: #{drug_mixedfp_forward.1} parent=31 // pred_check
              _
            $region38: #{drug_mixedfp_forward.1} parent=31 // pred_check_branch
              %192 = sbr.rel (0) target = $region40
            $region39: #{drug_mixedfp_forward.1} parent=31 // pred_region
              loop: start=0, step=1, limit=1
              $region41: #{drug_mixedfp_forward.1} parent=39 // loop_pre_header
                _
              $region42: #{drug_mixedfp_forward.1} parent=39 // loop_header
                %s195 = sphi 0, %s199
                %p196 = scmp.ge.s32.totalorder %s195, 1
                %s200 = sphi %s186, %s186
                %s201 = sphi %s184, %s184
              $region43: #{drug_mixedfp_forward.1} parent=39 // loop_header_branch
                %198 = sbr.rel (%p196) target = $region47
              $region44: #{drug_mixedfp_forward.1} parent=39 // loop_body
                %v202 = vld [vmem:[%s200] sm:$0xf]
                %203 = vst [vmem:[%s201] sm:$0xf] %v202
                %v204 = vld [vmem:[%s200 + $0x10] sm:$0xf]
                %205 = vst [vmem:[%s201 + $0x4] sm:$0xf] %v204
                %v206 = vld [vmem:[%s200 + $0x20] sm:$0xf]
                %207 = vst [vmem:[%s201 + $0x8] sm:$0xf] %v206
                %v208 = vld [vmem:[%s200 + $0x30] sm:$0xf]
                %209 = vst [vmem:[%s201 + $0xc] sm:$0xf] %v208
                %v210 = vld [vmem:[%s200 + $0x40] sm:$0xf]
                %211 = vst [vmem:[%s201 + $0x10] sm:$0xf] %v210
                %v212 = vld [vmem:[%s200 + $0x50] sm:$0xf]
                %213 = vst [vmem:[%s201 + $0x14] sm:$0xf] %v212
                %v214 = vld [vmem:[%s200 + $0x60] sm:$0xf]
                %215 = vst [vmem:[%s201 + $0x18] sm:$0xf] %v214
                %v216 = vld [vmem:[%s200 + $0x70] sm:$0xf]
                %217 = vst [vmem:[%s201 + $0x1c] sm:$0xf] %v216
                %v218 = vld [vmem:[%s200 + $0x80] sm:$0xf]
                %219 = vst [vmem:[%s201 + $0x20] sm:$0xf] %v218
                %v220 = vld [vmem:[%s200 + $0x90] sm:$0xf]
                %221 = vst [vmem:[%s201 + $0x24] sm:$0xf] %v220
                %v222 = vld [vmem:[%s200 + $0xa0] sm:$0xf]
                %223 = vst [vmem:[%s201 + $0x28] sm:$0xf] %v222
                %v224 = vld [vmem:[%s200 + $0xb0] sm:$0xf]
                %225 = vst [vmem:[%s201 + $0x2c] sm:$0xf] %v224
                %v226 = vld [vmem:[%s200 + $0xc0] sm:$0xf]
                %227 = vst [vmem:[%s201 + $0x30] sm:$0xf] %v226
                %v228 = vld [vmem:[%s200 + $0xd0] sm:$0xf]
                %229 = vst [vmem:[%s201 + $0x34] sm:$0xf] %v228
                %v230 = vld [vmem:[%s200 + $0xe0] sm:$0xf]
                %231 = vst [vmem:[%s201 + $0x38] sm:$0xf] %v230
                %v232 = vld [vmem:[%s200 + $0xf0] sm:$0xf]
                %233 = vst [vmem:[%s201 + $0x3c] sm:$0xf] %v232
                %v234 = vld [vmem:[%s200 + $0x100] sm:$0xf]
                %235 = vst [vmem:[%s201 + $0x40] sm:$0xf] %v234
                %v236 = vld [vmem:[%s200 + $0x110] sm:$0xf]
                %237 = vst [vmem:[%s201 + $0x44] sm:$0xf] %v236
                %v238 = vld [vmem:[%s200 + $0x120] sm:$0xf]
                %239 = vst [vmem:[%s201 + $0x48] sm:$0xf] %v238
                %v240 = vld [vmem:[%s200 + $0x130] sm:$0xf]
                %241 = vst [vmem:[%s201 + $0x4c] sm:$0xf] %v240
                %v242 = vld [vmem:[%s200 + $0x140] sm:$0xf]
                %243 = vst [vmem:[%s201 + $0x50] sm:$0xf] %v242
                %v244 = vld [vmem:[%s200 + $0x150] sm:$0xf]
                %245 = vst [vmem:[%s201 + $0x54] sm:$0xf] %v244
                %v246 = vld [vmem:[%s200 + $0x160] sm:$0xf]
                %247 = vst [vmem:[%s201 + $0x58] sm:$0xf] %v246
                %v248 = vld [vmem:[%s200 + $0x170] sm:$0xf]
                %249 = vst [vmem:[%s201 + $0x5c] sm:$0xf] %v248
                %v250 = vld [vmem:[%s200 + $0x180] sm:$0xf]
                %251 = vst [vmem:[%s201 + $0x60] sm:$0xf] %v250
                %v252 = vld [vmem:[%s200 + $0x190] sm:$0xf]
                %253 = vst [vmem:[%s201 + $0x64] sm:$0xf] %v252
                %v254 = vld [vmem:[%s200 + $0x1a0] sm:$0xf]
                %255 = vst [vmem:[%s201 + $0x68] sm:$0xf] %v254
                %v256 = vld [vmem:[%s200 + $0x1b0] sm:$0xf]
                %257 = vst [vmem:[%s201 + $0x6c] sm:$0xf] %v256
                %v258 = vld [vmem:[%s200 + $0x1c0] sm:$0xf]
                %259 = vst [vmem:[%s201 + $0x70] sm:$0xf] %v258
                %v260 = vld [vmem:[%s200 + $0x1d0] sm:$0xf]
                %261 = vst [vmem:[%s201 + $0x74] sm:$0xf] %v260
                %v262 = vld [vmem:[%s200 + $0x1e0] sm:$0xf]
                %263 = vst [vmem:[%s201 + $0x78] sm:$0xf] %v262
                %v264 = vld [vmem:[%s200 + $0x1f0] sm:$0xf]
                %265 = vst [vmem:[%s201 + $0x7c] sm:$0xf] %v264
                %v266 = vld [vmem:[%s200 + $0x200] sm:$0xf]
                %267 = vst [vmem:[%s201 + $0x80] sm:$0xf] %v266
                %v268 = vld [vmem:[%s200 + $0x210] sm:$0xf]
                %269 = vst [vmem:[%s201 + $0x84] sm:$0xf] %v268
                %v270 = vld [vmem:[%s200 + $0x220] sm:$0xf]
                %271 = vst [vmem:[%s201 + $0x88] sm:$0xf] %v270
                %v272 = vld [vmem:[%s200 + $0x230] sm:$0xf]
                %273 = vst [vmem:[%s201 + $0x8c] sm:$0xf] %v272
                %v274 = vld [vmem:[%s200 + $0x240] sm:$0xf]
                %275 = vst [vmem:[%s201 + $0x90] sm:$0xf] %v274
                %v276 = vld [vmem:[%s200 + $0x250] sm:$0xf]
                %277 = vst [vmem:[%s201 + $0x94] sm:$0xf] %v276
                %v278 = vld [vmem:[%s200 + $0x260] sm:$0xf]
                %279 = vst [vmem:[%s201 + $0x98] sm:$0xf] %v278
                %v280 = vld [vmem:[%s200 + $0x270] sm:$0xf]
                %281 = vst [vmem:[%s201 + $0x9c] sm:$0xf] %v280
                %v282 = vld [vmem:[%s200 + $0x280] sm:$0xf]
                %283 = vst [vmem:[%s201 + $0xa0] sm:$0xf] %v282
                %v284 = vld [vmem:[%s200 + $0x290] sm:$0xf]
                %285 = vst [vmem:[%s201 + $0xa4] sm:$0xf] %v284
                %v286 = vld [vmem:[%s200 + $0x2a0] sm:$0xf]
                %287 = vst [vmem:[%s201 + $0xa8] sm:$0xf] %v286
                %v288 = vld [vmem:[%s200 + $0x2b0] sm:$0xf]
                %289 = vst [vmem:[%s201 + $0xac] sm:$0xf] %v288
                %v290 = vld [vmem:[%s200 + $0x2c0] sm:$0xf]
                %291 = vst [vmem:[%s201 + $0xb0] sm:$0xf] %v290
                %v292 = vld [vmem:[%s200 + $0x2d0] sm:$0xf]
                %293 = vst [vmem:[%s201 + $0xb4] sm:$0xf] %v292
                %v294 = vld [vmem:[%s200 + $0x2e0] sm:$0xf]
                %295 = vst [vmem:[%s201 + $0xb8] sm:$0xf] %v294
                %v296 = vld [vmem:[%s200 + $0x2f0] sm:$0xf]
                %297 = vst [vmem:[%s201 + $0xbc] sm:$0xf] %v296
                %v298 = vld [vmem:[%s200 + $0x300] sm:$0xf]
                %299 = vst [vmem:[%s201 + $0xc0] sm:$0xf] %v298
                %v300 = vld [vmem:[%s200 + $0x310] sm:$0xf]
                %301 = vst [vmem:[%s201 + $0xc4] sm:$0xf] %v300
                %v302 = vld [vmem:[%s200 + $0x320] sm:$0xf]
                %303 = vst [vmem:[%s201 + $0xc8] sm:$0xf] %v302
                %v304 = vld [vmem:[%s200 + $0x330] sm:$0xf]
                %305 = vst [vmem:[%s201 + $0xcc] sm:$0xf] %v304
                %v306 = vld [vmem:[%s200 + $0x340] sm:$0xf]
                %307 = vst [vmem:[%s201 + $0xd0] sm:$0xf] %v306
                %v308 = vld [vmem:[%s200 + $0x350] sm:$0xf]
                %309 = vst [vmem:[%s201 + $0xd4] sm:$0xf] %v308
                %v310 = vld [vmem:[%s200 + $0x360] sm:$0xf]
                %311 = vst [vmem:[%s201 + $0xd8] sm:$0xf] %v310
                %v312 = vld [vmem:[%s200 + $0x370] sm:$0xf]
                %313 = vst [vmem:[%s201 + $0xdc] sm:$0xf] %v312
                %v314 = vld [vmem:[%s200 + $0x380] sm:$0xf]
                %315 = vst [vmem:[%s201 + $0xe0] sm:$0xf] %v314
                %v316 = vld [vmem:[%s200 + $0x390] sm:$0xf]
                %317 = vst [vmem:[%s201 + $0xe4] sm:$0xf] %v316
                %v318 = vld [vmem:[%s200 + $0x3a0] sm:$0xf]
                %319 = vst [vmem:[%s201 + $0xe8] sm:$0xf] %v318
                %v320 = vld [vmem:[%s200 + $0x3b0] sm:$0xf]
                %321 = vst [vmem:[%s201 + $0xec] sm:$0xf] %v320
                %v322 = vld [vmem:[%s200 + $0x3c0] sm:$0xf]
                %323 = vst [vmem:[%s201 + $0xf0] sm:$0xf] %v322
                %v324 = vld [vmem:[%s200 + $0x3d0] sm:$0xf]
                %325 = vst [vmem:[%s201 + $0xf4] sm:$0xf] %v324
                %v326 = vld [vmem:[%s200 + $0x3e0] sm:$0xf]
                %327 = vst [vmem:[%s201 + $0xf8] sm:$0xf] %v326
                %v328 = vld [vmem:[%s200 + $0x3f0] sm:$0xf]
                %329 = vst [vmem:[%s201 + $0xfc] sm:$0xf] %v328
                %v330 = vld [vmem:[%s200 + $0x400] sm:$0xf]
                %331 = vst [vmem:[%s201 + $0x100] sm:$0xf] %v330
                %v332 = vld [vmem:[%s200 + $0x410] sm:$0xf]
                %333 = vst [vmem:[%s201 + $0x104] sm:$0xf] %v332
                %v334 = vld [vmem:[%s200 + $0x420] sm:$0xf]
                %335 = vst [vmem:[%s201 + $0x108] sm:$0xf] %v334
                %v336 = vld [vmem:[%s200 + $0x430] sm:$0xf]
                %337 = vst [vmem:[%s201 + $0x10c] sm:$0xf] %v336
                %v338 = vld [vmem:[%s200 + $0x440] sm:$0xf]
                %339 = vst [vmem:[%s201 + $0x110] sm:$0xf] %v338
                %v340 = vld [vmem:[%s200 + $0x450] sm:$0xf]
                %341 = vst [vmem:[%s201 + $0x114] sm:$0xf] %v340
                %v342 = vld [vmem:[%s200 + $0x460] sm:$0xf]
                %343 = vst [vmem:[%s201 + $0x118] sm:$0xf] %v342
                %v344 = vld [vmem:[%s200 + $0x470] sm:$0xf]
                %345 = vst [vmem:[%s201 + $0x11c] sm:$0xf] %v344
                %v346 = vld [vmem:[%s200 + $0x480] sm:$0xf]
                %347 = vst [vmem:[%s201 + $0x120] sm:$0xf] %v346
                %v348 = vld [vmem:[%s200 + $0x490] sm:$0xf]
                %349 = vst [vmem:[%s201 + $0x124] sm:$0xf] %v348
                %v350 = vld [vmem:[%s200 + $0x4a0] sm:$0xf]
                %351 = vst [vmem:[%s201 + $0x128] sm:$0xf] %v350
                %v352 = vld [vmem:[%s200 + $0x4b0] sm:$0xf]
                %353 = vst [vmem:[%s201 + $0x12c] sm:$0xf] %v352
                %v354 = vld [vmem:[%s200 + $0x4c0] sm:$0xf]
                %355 = vst [vmem:[%s201 + $0x130] sm:$0xf] %v354
                %v356 = vld [vmem:[%s200 + $0x4d0] sm:$0xf]
                %357 = vst [vmem:[%s201 + $0x134] sm:$0xf] %v356
                %v358 = vld [vmem:[%s200 + $0x4e0] sm:$0xf]
                %359 = vst [vmem:[%s201 + $0x138] sm:$0xf] %v358
                %v360 = vld [vmem:[%s200 + $0x4f0] sm:$0xf]
                %361 = vst [vmem:[%s201 + $0x13c] sm:$0xf] %v360
                %v362 = vld [vmem:[%s200 + $0x500] sm:$0xf]
                %363 = vst [vmem:[%s201 + $0x140] sm:$0xf] %v362
                %v364 = vld [vmem:[%s200 + $0x510] sm:$0xf]
                %365 = vst [vmem:[%s201 + $0x144] sm:$0xf] %v364
                %v366 = vld [vmem:[%s200 + $0x520] sm:$0xf]
                %367 = vst [vmem:[%s201 + $0x148] sm:$0xf] %v366
                %v368 = vld [vmem:[%s200 + $0x530] sm:$0xf]
                %369 = vst [vmem:[%s201 + $0x14c] sm:$0xf] %v368
                %v370 = vld [vmem:[%s200 + $0x540] sm:$0xf]
                %371 = vst [vmem:[%s201 + $0x150] sm:$0xf] %v370
                %v372 = vld [vmem:[%s200 + $0x550] sm:$0xf]
                %373 = vst [vmem:[%s201 + $0x154] sm:$0xf] %v372
                %v374 = vld [vmem:[%s200 + $0x560] sm:$0xf]
                %375 = vst [vmem:[%s201 + $0x158] sm:$0xf] %v374
                %v376 = vld [vmem:[%s200 + $0x570] sm:$0xf]
                %377 = vst [vmem:[%s201 + $0x15c] sm:$0xf] %v376
                %v378 = vld [vmem:[%s200 + $0x580] sm:$0xf]
                %379 = vst [vmem:[%s201 + $0x160] sm:$0xf] %v378
                %v380 = vld [vmem:[%s200 + $0x590] sm:$0xf]
                %381 = vst [vmem:[%s201 + $0x164] sm:$0xf] %v380
                %v382 = vld [vmem:[%s200 + $0x5a0] sm:$0xf]
                %383 = vst [vmem:[%s201 + $0x168] sm:$0xf] %v382
                %v384 = vld [vmem:[%s200 + $0x5b0] sm:$0xf]
                %385 = vst [vmem:[%s201 + $0x16c] sm:$0xf] %v384
                %v386 = vld [vmem:[%s200 + $0x5c0] sm:$0xf]
                %387 = vst [vmem:[%s201 + $0x170] sm:$0xf] %v386
                %v388 = vld [vmem:[%s200 + $0x5d0] sm:$0xf]
                %389 = vst [vmem:[%s201 + $0x174] sm:$0xf] %v388
                %v390 = vld [vmem:[%s200 + $0x5e0] sm:$0xf]
                %391 = vst [vmem:[%s201 + $0x178] sm:$0xf] %v390
                %v392 = vld [vmem:[%s200 + $0x5f0] sm:$0xf]
                %393 = vst [vmem:[%s201 + $0x17c] sm:$0xf] %v392
                %v394 = vld [vmem:[%s200 + $0x600] sm:$0xf]
                %395 = vst [vmem:[%s201 + $0x180] sm:$0xf] %v394
                %v396 = vld [vmem:[%s200 + $0x610] sm:$0xf]
                %397 = vst [vmem:[%s201 + $0x184] sm:$0xf] %v396
                %v398 = vld [vmem:[%s200 + $0x620] sm:$0xf]
                %399 = vst [vmem:[%s201 + $0x188] sm:$0xf] %v398
                %v400 = vld [vmem:[%s200 + $0x630] sm:$0xf]
                %401 = vst [vmem:[%s201 + $0x18c] sm:$0xf] %v400
                %v402 = vld [vmem:[%s200 + $0x640] sm:$0xf]
                %403 = vst [vmem:[%s201 + $0x190] sm:$0xf] %v402
                %v404 = vld [vmem:[%s200 + $0x650] sm:$0xf]
                %405 = vst [vmem:[%s201 + $0x194] sm:$0xf] %v404
                %v406 = vld [vmem:[%s200 + $0x660] sm:$0xf]
                %407 = vst [vmem:[%s201 + $0x198] sm:$0xf] %v406
                %v408 = vld [vmem:[%s200 + $0x670] sm:$0xf]
                %409 = vst [vmem:[%s201 + $0x19c] sm:$0xf] %v408
                %v410 = vld [vmem:[%s200 + $0x680] sm:$0xf]
                %411 = vst [vmem:[%s201 + $0x1a0] sm:$0xf] %v410
                %v412 = vld [vmem:[%s200 + $0x690] sm:$0xf]
                %413 = vst [vmem:[%s201 + $0x1a4] sm:$0xf] %v412
                %v414 = vld [vmem:[%s200 + $0x6a0] sm:$0xf]
                %415 = vst [vmem:[%s201 + $0x1a8] sm:$0xf] %v414
                %v416 = vld [vmem:[%s200 + $0x6b0] sm:$0xf]
                %417 = vst [vmem:[%s201 + $0x1ac] sm:$0xf] %v416
                %v418 = vld [vmem:[%s200 + $0x6c0] sm:$0xf]
                %419 = vst [vmem:[%s201 + $0x1b0] sm:$0xf] %v418
                %v420 = vld [vmem:[%s200 + $0x6d0] sm:$0xf]
                %421 = vst [vmem:[%s201 + $0x1b4] sm:$0xf] %v420
                %v422 = vld [vmem:[%s200 + $0x6e0] sm:$0xf]
                %423 = vst [vmem:[%s201 + $0x1b8] sm:$0xf] %v422
                %v424 = vld [vmem:[%s200 + $0x6f0] sm:$0xf]
                %425 = vst [vmem:[%s201 + $0x1bc] sm:$0xf] %v424
                %v426 = vld [vmem:[%s200 + $0x700] sm:$0xf]
                %427 = vst [vmem:[%s201 + $0x1c0] sm:$0xf] %v426
                %v428 = vld [vmem:[%s200 + $0x710] sm:$0xf]
                %429 = vst [vmem:[%s201 + $0x1c4] sm:$0xf] %v428
                %v430 = vld [vmem:[%s200 + $0x720] sm:$0xf]
                %431 = vst [vmem:[%s201 + $0x1c8] sm:$0xf] %v430
                %v432 = vld [vmem:[%s200 + $0x730] sm:$0xf]
                %433 = vst [vmem:[%s201 + $0x1cc] sm:$0xf] %v432
                %v434 = vld [vmem:[%s200 + $0x740] sm:$0xf]
                %435 = vst [vmem:[%s201 + $0x1d0] sm:$0xf] %v434
                %v436 = vld [vmem:[%s200 + $0x750] sm:$0xf]
                %437 = vst [vmem:[%s201 + $0x1d4] sm:$0xf] %v436
                %v438 = vld [vmem:[%s200 + $0x760] sm:$0xf]
                %439 = vst [vmem:[%s201 + $0x1d8] sm:$0xf] %v438
                %v440 = vld [vmem:[%s200 + $0x770] sm:$0xf]
                %441 = vst [vmem:[%s201 + $0x1dc] sm:$0xf] %v440
                %v442 = vld [vmem:[%s200 + $0x780] sm:$0xf]
                %443 = vst [vmem:[%s201 + $0x1e0] sm:$0xf] %v442
                %v444 = vld [vmem:[%s200 + $0x790] sm:$0xf]
                %445 = vst [vmem:[%s201 + $0x1e4] sm:$0xf] %v444
                %v446 = vld [vmem:[%s200 + $0x7a0] sm:$0xf]
                %447 = vst [vmem:[%s201 + $0x1e8] sm:$0xf] %v446
                %v448 = vld [vmem:[%s200 + $0x7b0] sm:$0xf]
                %449 = vst [vmem:[%s201 + $0x1ec] sm:$0xf] %v448
                %v450 = vld [vmem:[%s200 + $0x7c0] sm:$0xf]
                %451 = vst [vmem:[%s201 + $0x1f0] sm:$0xf] %v450
                %v452 = vld [vmem:[%s200 + $0x7d0] sm:$0xf]
                %453 = vst [vmem:[%s201 + $0x1f4] sm:$0xf] %v452
                %v454 = vld [vmem:[%s200 + $0x7e0] sm:$0xf]
                %455 = vst [vmem:[%s201 + $0x1f8] sm:$0xf] %v454
                %v456 = vld [vmem:[%s200 + $0x7f0] sm:$0xf]
                %457 = vst [vmem:[%s201 + $0x1fc] sm:$0xf] %v456
                %v458 = vld [vmem:[%s200 + $0x800] sm:$0xf]
                %459 = vst [vmem:[%s201 + $0x200] sm:$0xf] %v458
                %v460 = vld [vmem:[%s200 + $0x810] sm:$0xf]
                %461 = vst [vmem:[%s201 + $0x204] sm:$0xf] %v460
                %v462 = vld [vmem:[%s200 + $0x820] sm:$0xf]
                %463 = vst [vmem:[%s201 + $0x208] sm:$0xf] %v462
                %v464 = vld [vmem:[%s200 + $0x830] sm:$0xf]
                %465 = vst [vmem:[%s201 + $0x20c] sm:$0xf] %v464
                %v466 = vld [vmem:[%s200 + $0x840] sm:$0xf]
                %467 = vst [vmem:[%s201 + $0x210] sm:$0xf] %v466
                %v468 = vld [vmem:[%s200 + $0x850] sm:$0xf]
                %469 = vst [vmem:[%s201 + $0x214] sm:$0xf] %v468
                %v470 = vld [vmem:[%s200 + $0x860] sm:$0xf]
                %471 = vst [vmem:[%s201 + $0x218] sm:$0xf] %v470
                %v472 = vld [vmem:[%s200 + $0x870] sm:$0xf]
                %473 = vst [vmem:[%s201 + $0x21c] sm:$0xf] %v472
                %v474 = vld [vmem:[%s200 + $0x880] sm:$0xf]
                %475 = vst [vmem:[%s201 + $0x220] sm:$0xf] %v474
                %v476 = vld [vmem:[%s200 + $0x890] sm:$0xf]
                %477 = vst [vmem:[%s201 + $0x224] sm:$0xf] %v476
                %v478 = vld [vmem:[%s200 + $0x8a0] sm:$0xf]
                %479 = vst [vmem:[%s201 + $0x228] sm:$0xf] %v478
                %v480 = vld [vmem:[%s200 + $0x8b0] sm:$0xf]
                %481 = vst [vmem:[%s201 + $0x22c] sm:$0xf] %v480
                %v482 = vld [vmem:[%s200 + $0x8c0] sm:$0xf]
                %483 = vst [vmem:[%s201 + $0x230] sm:$0xf] %v482
                %v484 = vld [vmem:[%s200 + $0x8d0] sm:$0xf]
                %485 = vst [vmem:[%s201 + $0x234] sm:$0xf] %v484
                %v486 = vld [vmem:[%s200 + $0x8e0] sm:$0xf]
                %487 = vst [vmem:[%s201 + $0x238] sm:$0xf] %v486
                %v488 = vld [vmem:[%s200 + $0x8f0] sm:$0xf]
                %489 = vst [vmem:[%s201 + $0x23c] sm:$0xf] %v488
                %v490 = vld [vmem:[%s200 + $0x900] sm:$0xf]
                %491 = vst [vmem:[%s201 + $0x240] sm:$0xf] %v490
                %v492 = vld [vmem:[%s200 + $0x910] sm:$0xf]
                %493 = vst [vmem:[%s201 + $0x244] sm:$0xf] %v492
                %v494 = vld [vmem:[%s200 + $0x920] sm:$0xf]
                %495 = vst [vmem:[%s201 + $0x248] sm:$0xf] %v494
                %v496 = vld [vmem:[%s200 + $0x930] sm:$0xf]
                %497 = vst [vmem:[%s201 + $0x24c] sm:$0xf] %v496
                %v498 = vld [vmem:[%s200 + $0x940] sm:$0xf]
                %499 = vst [vmem:[%s201 + $0x250] sm:$0xf] %v498
                %v500 = vld [vmem:[%s200 + $0x950] sm:$0xf]
                %501 = vst [vmem:[%s201 + $0x254] sm:$0xf] %v500
                %v502 = vld [vmem:[%s200 + $0x960] sm:$0xf]
                %503 = vst [vmem:[%s201 + $0x258] sm:$0xf] %v502
                %v504 = vld [vmem:[%s200 + $0x970] sm:$0xf]
                %505 = vst [vmem:[%s201 + $0x25c] sm:$0xf] %v504
                %v506 = vld [vmem:[%s200 + $0x980] sm:$0xf]
                %507 = vst [vmem:[%s201 + $0x260] sm:$0xf] %v506
                %v508 = vld [vmem:[%s200 + $0x990] sm:$0xf]
                %509 = vst [vmem:[%s201 + $0x264] sm:$0xf] %v508
                %v510 = vld [vmem:[%s200 + $0x9a0] sm:$0xf]
                %511 = vst [vmem:[%s201 + $0x268] sm:$0xf] %v510
                %v512 = vld [vmem:[%s200 + $0x9b0] sm:$0xf]
                %513 = vst [vmem:[%s201 + $0x26c] sm:$0xf] %v512
                %v514 = vld [vmem:[%s200 + $0x9c0] sm:$0xf]
                %515 = vst [vmem:[%s201 + $0x270] sm:$0xf] %v514
                %v516 = vld [vmem:[%s200 + $0x9d0] sm:$0xf]
                %517 = vst [vmem:[%s201 + $0x274] sm:$0xf] %v516
                %v518 = vld [vmem:[%s200 + $0x9e0] sm:$0xf]
                %519 = vst [vmem:[%s201 + $0x278] sm:$0xf] %v518
                %v520 = vld [vmem:[%s200 + $0x9f0] sm:$0xf]
                %521 = vst [vmem:[%s201 + $0x27c] sm:$0xf] %v520
                %v522 = vld [vmem:[%s200 + $0xa00] sm:$0xf]
                %523 = vst [vmem:[%s201 + $0x280] sm:$0xf] %v522
                %v524 = vld [vmem:[%s200 + $0xa10] sm:$0xf]
                %525 = vst [vmem:[%s201 + $0x284] sm:$0xf] %v524
                %v526 = vld [vmem:[%s200 + $0xa20] sm:$0xf]
                %527 = vst [vmem:[%s201 + $0x288] sm:$0xf] %v526
                %v528 = vld [vmem:[%s200 + $0xa30] sm:$0xf]
                %529 = vst [vmem:[%s201 + $0x28c] sm:$0xf] %v528
                %v530 = vld [vmem:[%s200 + $0xa40] sm:$0xf]
                %531 = vst [vmem:[%s201 + $0x290] sm:$0xf] %v530
                %v532 = vld [vmem:[%s200 + $0xa50] sm:$0xf]
                %533 = vst [vmem:[%s201 + $0x294] sm:$0xf] %v532
                %v534 = vld [vmem:[%s200 + $0xa60] sm:$0xf]
                %535 = vst [vmem:[%s201 + $0x298] sm:$0xf] %v534
                %v536 = vld [vmem:[%s200 + $0xa70] sm:$0xf]
                %537 = vst [vmem:[%s201 + $0x29c] sm:$0xf] %v536
                %v538 = vld [vmem:[%s200 + $0xa80] sm:$0xf]
                %539 = vst [vmem:[%s201 + $0x2a0] sm:$0xf] %v538
                %v540 = vld [vmem:[%s200 + $0xa90] sm:$0xf]
                %541 = vst [vmem:[%s201 + $0x2a4] sm:$0xf] %v540
                %v542 = vld [vmem:[%s200 + $0xaa0] sm:$0xf]
                %543 = vst [vmem:[%s201 + $0x2a8] sm:$0xf] %v542
                %v544 = vld [vmem:[%s200 + $0xab0] sm:$0xf]
                %545 = vst [vmem:[%s201 + $0x2ac] sm:$0xf] %v544
                %v546 = vld [vmem:[%s200 + $0xac0] sm:$0xf]
                %547 = vst [vmem:[%s201 + $0x2b0] sm:$0xf] %v546
                %v548 = vld [vmem:[%s200 + $0xad0] sm:$0xf]
                %549 = vst [vmem:[%s201 + $0x2b4] sm:$0xf] %v548
                %v550 = vld [vmem:[%s200 + $0xae0] sm:$0xf]
                %551 = vst [vmem:[%s201 + $0x2b8] sm:$0xf] %v550
                %v552 = vld [vmem:[%s200 + $0xaf0] sm:$0xf]
                %553 = vst [vmem:[%s201 + $0x2bc] sm:$0xf] %v552
                %v554 = vld [vmem:[%s200 + $0xb00] sm:$0xf]
                %555 = vst [vmem:[%s201 + $0x2c0] sm:$0xf] %v554
                %v556 = vld [vmem:[%s200 + $0xb10] sm:$0xf]
                %557 = vst [vmem:[%s201 + $0x2c4] sm:$0xf] %v556
                %v558 = vld [vmem:[%s200 + $0xb20] sm:$0xf]
                %559 = vst [vmem:[%s201 + $0x2c8] sm:$0xf] %v558
                %v560 = vld [vmem:[%s200 + $0xb30] sm:$0xf]
                %561 = vst [vmem:[%s201 + $0x2cc] sm:$0xf] %v560
                %v562 = vld [vmem:[%s200 + $0xb40] sm:$0xf]
                %563 = vst [vmem:[%s201 + $0x2d0] sm:$0xf] %v562
                %v564 = vld [vmem:[%s200 + $0xb50] sm:$0xf]
                %565 = vst [vmem:[%s201 + $0x2d4] sm:$0xf] %v564
                %v566 = vld [vmem:[%s200 + $0xb60] sm:$0xf]
                %567 = vst [vmem:[%s201 + $0x2d8] sm:$0xf] %v566
                %v568 = vld [vmem:[%s200 + $0xb70] sm:$0xf]
                %569 = vst [vmem:[%s201 + $0x2dc] sm:$0xf] %v568
                %v570 = vld [vmem:[%s200 + $0xb80] sm:$0xf]
                %571 = vst [vmem:[%s201 + $0x2e0] sm:$0xf] %v570
                %v572 = vld [vmem:[%s200 + $0xb90] sm:$0xf]
                %573 = vst [vmem:[%s201 + $0x2e4] sm:$0xf] %v572
                %v574 = vld [vmem:[%s200 + $0xba0] sm:$0xf]
                %575 = vst [vmem:[%s201 + $0x2e8] sm:$0xf] %v574
                %v576 = vld [vmem:[%s200 + $0xbb0] sm:$0xf]
                %577 = vst [vmem:[%s201 + $0x2ec] sm:$0xf] %v576
                %v578 = vld [vmem:[%s200 + $0xbc0] sm:$0xf]
                %579 = vst [vmem:[%s201 + $0x2f0] sm:$0xf] %v578
                %v580 = vld [vmem:[%s200 + $0xbd0] sm:$0xf]
                %581 = vst [vmem:[%s201 + $0x2f4] sm:$0xf] %v580
                %v582 = vld [vmem:[%s200 + $0xbe0] sm:$0xf]
                %583 = vst [vmem:[%s201 + $0x2f8] sm:$0xf] %v582
                %v584 = vld [vmem:[%s200 + $0xbf0] sm:$0xf]
                %585 = vst [vmem:[%s201 + $0x2fc] sm:$0xf] %v584
              $region45: #{drug_mixedfp_forward.1} parent=39 // loop_footer
                %s199 = sadd.s32 1, %s195
              $region46: #{drug_mixedfp_forward.1} parent=39 // loop_footer_branch
                %194 = sbr.rel target = $region42
              $region47: #{drug_mixedfp_forward.1} parent=39 // loop_exit
                _
            $region40: #{drug_mixedfp_forward.1} parent=31 // pred_fallthru
              _
          $region32: #{drug_mixedfp_forward.1} parent=27 // pred_fallthru
            _
          %989 = vnop
        $region28: #{drug_mixedfp_forward.1} parent=23 // pred_fallthru
          _
        // Predicated region
        $region66: #{drug_mixedfp_forward.1} parent=23 // pred_check
          %p990 = pneg %p79
        $region67: #{drug_mixedfp_forward.1} parent=23 // pred_check_branch
          %992 = sbr.rel (%p990) target = $region69
        $region68: #{drug_mixedfp_forward.1} parent=23 // pred_region
          %p993 = scmp.lt.s32.totalorder %s12, 3
          %s994 = scalar_select %p993, %s12, 3
          %s995 = scalar_lea.vmem %s2, %s994
        $region69: #{drug_mixedfp_forward.1} parent=23 // pred_fallthru
          _
        // Predicated region
        $region70: #{drug_mixedfp_forward.1} parent=23 // pred_check
          %p996 = pneg %p105
        $region71: #{drug_mixedfp_forward.1} parent=23 // pred_check_branch
          %998 = sbr.rel (%p996) target = $region73
        $region72: #{drug_mixedfp_forward.1} parent=23 // pred_region
          %s999 = smul.u32 16, %s12
          %p1000 = scmp.lt.s32.totalorder %s999, 63
          %s1001 = scalar_select %p1000, %s999, 63
          %s1002 = smul.addr %s1001, 4
          %s1003 = scalar_lea.vmem %s3, %s1002
          %s1004 = smul.u32 16, %s12
        $region73: #{drug_mixedfp_forward.1} parent=23 // pred_fallthru
          _
      $region24: #{drug_mixedfp_forward.1} parent=5 // pred_fallthru
        _
      %p1005 = scmp.le.s32.totalorder 1, %s12
      %p1006 = scmp.lt.s32.totalorder %s12, 5
      %p1007 = pnand %p1005, %p1006
      %p1008 = pneg %p1007
      // Predicated region
      $region74: #{drug_mixedfp_forward.1} parent=5 // pred_check
        _
      $region75: #{drug_mixedfp_forward.1} parent=5 // pred_check_branch
        %1010 = sbr.rel (%p1007) target = $region77
      $region76: #{drug_mixedfp_forward.1} parent=5 // pred_region
        %s1011 = ssub.s32 %s12, 1
        %s1012 = sand.u32 %s46, 1
        %s1013 = sand.u32 %s46, 1
        %s1014 = smul.addr %s1013, 768
        %s1015 = scalar_lea.vmem [#allocation3], %s1014
        // Predicated region
        $region78: #{drug_mixedfp_forward.1} parent=76 // pred_check
          %p1016 = pneg %p59
        $region79: #{drug_mixedfp_forward.1} parent=76 // pred_check_branch
          %1018 = sbr.rel (%p1016) target = $region81
        $region80: #{drug_mixedfp_forward.1} parent=76 // pred_region
          _
        $region81: #{drug_mixedfp_forward.1} parent=76 // pred_fallthru
          _
        %p1019 = pneg %p33
        %p1020 = pneg %p30
        %s1021 = sand.u32 %s46, 1
        %s1022 = sand.u32 %s46, 1
        %s1023 = smul.addr %s1022, 768
        %s1024 = scalar_lea.vmem [#allocation3], %s1023
        %p1025 = pneg %p59
        %p1026 = pneg %p56
        %p1027 = scmp.lt.s32.totalorder %s17, 3
        %s1028 = scalar_select %p1027, %s17, 3
        %s1029 = scalar_lea.vmem %s2, %s1028
        %p1030 = pneg %p85
        %p1031 = pneg %p82
        %s1032 = smul.u32 16, %s17
        %p1033 = scmp.lt.s32.totalorder %s1032, 63
        %s1034 = scalar_select %p1033, %s1032, 63
        %s1035 = smul.addr %s1034, 4
        %s1036 = scalar_lea.vmem %s3, %s1035
        %p1037 = pneg %p111
        %p1038 = pneg %p108
        %p1039 = pneg %p132
        %p1040 = pneg %p129
        %p1041 = pneg %p153
        %p1042 = pneg %p150
        %p1043 = scmp.lt.s32.totalorder %s17, 3
        %s1044 = scalar_select %p1043, %s17, 3
        %s1045 = scalar_lea.vmem %s2, %s1044
        %s1046 = smul.u32 16, %s17
        %p1047 = scmp.lt.s32.totalorder %s1046, 63
        %s1048 = scalar_select %p1047, %s1046, 63
        %s1049 = smul.addr %s1048, 4
        %s1050 = scalar_lea.vmem %s3, %s1049
        %s1051 = smul.u32 16, %s17
        %p1053 = scmp.eq.s32.totalorder %s17, 0
        // Predicated region
        $region82: #{drug_mixedfp_forward.1} parent=76 // pred_check
          %p1054 = pneg %p1053
        $region83: #{drug_mixedfp_forward.1} parent=76 // pred_check_branch
          %1056 = sbr.rel (%p1054) target = $region85
        $region84: #{drug_mixedfp_forward.1} parent=76 // pred_region
          %vm1057 = vcmask 261120
          %1058 = vst.msk [vmem:[#allocation2] sm:$0xff] %vm1057, 0.0
        $region85: #{drug_mixedfp_forward.1} parent=76 // pred_fallthru
          _
        %v1059 = vld [vmem:[%s0] sm:$0xff]
        %v1060 = vld [vmem:[%s0 + $0x8] sm:$0xff]
        %v1061 = vld [vmem:[%s0 + $0x10] sm:$0xff]
        %v1062 = vld [vmem:[%s0 + $0x18] sm:$0xff]
        %v1063 = vld [vmem:[%s0 + $0x20] sm:$0xff]
        %v1064 = vld [vmem:[%s0 + $0x28] sm:$0xff]
        %v1065 = vld [vmem:[%s1015] sm:$0xf]
        %v1066 = vld [vmem:[%s1015 + $0x4] sm:$0xf]
        %v1067 = vld [vmem:[%s1015 + $0x8] sm:$0xf]
        %v1068 = vld [vmem:[%s1015 + $0xc] sm:$0xf]
        %v1069 = vld [vmem:[%s1015 + $0x10] sm:$0xf]
        %v1070 = vld [vmem:[%s1015 + $0x14] sm:$0xf]
        %v1071 = vld [vmem:[%s1015 + $0x18] sm:$0xf]
        %v1072 = vld [vmem:[%s1015 + $0x1c] sm:$0xf]
        %v1073 = vld [vmem:[%s1015 + $0x20] sm:$0xf]
        %v1074 = vld [vmem:[%s1015 + $0x24] sm:$0xf]
        %v1075 = vld [vmem:[%s1015 + $0x28] sm:$0xf]
        %v1076 = vld [vmem:[%s1015 + $0x2c] sm:$0xf]
        %v1077 = vld [vmem:[%s1015 + $0x30] sm:$0xf]
        %v1078 = vld [vmem:[%s1015 + $0x34] sm:$0xf]
        %v1079 = vld [vmem:[%s1015 + $0x38] sm:$0xf]
        %v1080 = vld [vmem:[%s1015 + $0x3c] sm:$0xf]
        %v1081 = vld [vmem:[%s1015 + $0x40] sm:$0xf]
        %v1082 = vld [vmem:[%s1015 + $0x44] sm:$0xf]
        %v1083 = vld [vmem:[%s1015 + $0x48] sm:$0xf]
        %v1084 = vld [vmem:[%s1015 + $0x4c] sm:$0xf]
        %v1085 = vld [vmem:[%s1015 + $0x50] sm:$0xf]
        %v1086 = vld [vmem:[%s1015 + $0x54] sm:$0xf]
        %v1087 = vld [vmem:[%s1015 + $0x58] sm:$0xf]
        %v1088 = vld [vmem:[%s1015 + $0x5c] sm:$0xf]
        %v1089 = vld [vmem:[%s1015 + $0x60] sm:$0xf]
        %v1090 = vld [vmem:[%s1015 + $0x64] sm:$0xf]
        %v1091 = vld [vmem:[%s1015 + $0x68] sm:$0xf]
        %v1092 = vld [vmem:[%s1015 + $0x6c] sm:$0xf]
        %v1093 = vld [vmem:[%s1015 + $0x70] sm:$0xf]
        %v1094 = vld [vmem:[%s1015 + $0x74] sm:$0xf]
        %v1095 = vld [vmem:[%s1015 + $0x78] sm:$0xf]
        %v1096 = vld [vmem:[%s1015 + $0x7c] sm:$0xf]
        %v1097 = vld [vmem:[%s1015 + $0x80] sm:$0xf]
        %v1098 = vld [vmem:[%s1015 + $0x84] sm:$0xf]
        %v1099 = vld [vmem:[%s1015 + $0x88] sm:$0xf]
        %v1100 = vld [vmem:[%s1015 + $0x8c] sm:$0xf]
        %v1101 = vld [vmem:[%s1015 + $0x90] sm:$0xf]
        %v1102 = vld [vmem:[%s1015 + $0x94] sm:$0xf]
        %v1103 = vld [vmem:[%s1015 + $0x98] sm:$0xf]
        %v1104 = vld [vmem:[%s1015 + $0x9c] sm:$0xf]
        %v1105 = vld [vmem:[%s1015 + $0xa0] sm:$0xf]
        %v1106 = vld [vmem:[%s1015 + $0xa4] sm:$0xf]
        %v1107 = vld [vmem:[%s1015 + $0xa8] sm:$0xf]
        %v1108 = vld [vmem:[%s1015 + $0xac] sm:$0xf]
        %v1109 = vld [vmem:[%s1015 + $0xb0] sm:$0xf]
        %v1110 = vld [vmem:[%s1015 + $0xb4] sm:$0xf]
        %v1111 = vld [vmem:[%s1015 + $0xb8] sm:$0xf]
        %v1112 = vld [vmem:[%s1015 + $0xbc] sm:$0xf]
        %v1113 = vld [vmem:[%s1015 + $0xc0] sm:$0xf]
        %v1114 = vld [vmem:[%s1015 + $0xc4] sm:$0xf]
        %v1115 = vld [vmem:[%s1015 + $0xc8] sm:$0xf]
        %v1116 = vld [vmem:[%s1015 + $0xcc] sm:$0xf]
        %v1117 = vld [vmem:[%s1015 + $0xd0] sm:$0xf]
        %v1118 = vld [vmem:[%s1015 + $0xd4] sm:$0xf]
        %v1119 = vld [vmem:[%s1015 + $0xd8] sm:$0xf]
        %v1120 = vld [vmem:[%s1015 + $0xdc] sm:$0xf]
        %v1121 = vld [vmem:[%s1015 + $0xe0] sm:$0xf]
        %v1122 = vld [vmem:[%s1015 + $0xe4] sm:$0xf]
        %v1123 = vld [vmem:[%s1015 + $0xe8] sm:$0xf]
        %v1124 = vld [vmem:[%s1015 + $0xec] sm:$0xf]
        %v1125 = vld [vmem:[%s1015 + $0xf0] sm:$0xf]
        %v1126 = vld [vmem:[%s1015 + $0xf4] sm:$0xf]
        %v1127 = vld [vmem:[%s1015 + $0xf8] sm:$0xf]
        %v1128 = vld [vmem:[%s1015 + $0xfc] sm:$0xf]
        %v1129 = vld [vmem:[%s1015 + $0x100] sm:$0xf]
        %v1130 = vld [vmem:[%s1015 + $0x104] sm:$0xf]
        %v1131 = vld [vmem:[%s1015 + $0x108] sm:$0xf]
        %v1132 = vld [vmem:[%s1015 + $0x10c] sm:$0xf]
        %v1133 = vld [vmem:[%s1015 + $0x110] sm:$0xf]
        %v1134 = vld [vmem:[%s1015 + $0x114] sm:$0xf]
        %v1135 = vld [vmem:[%s1015 + $0x118] sm:$0xf]
        %v1136 = vld [vmem:[%s1015 + $0x11c] sm:$0xf]
        %v1137 = vld [vmem:[%s1015 + $0x120] sm:$0xf]
        %v1138 = vld [vmem:[%s1015 + $0x124] sm:$0xf]
        %v1139 = vld [vmem:[%s1015 + $0x128] sm:$0xf]
        %v1140 = vld [vmem:[%s1015 + $0x12c] sm:$0xf]
        %v1141 = vld [vmem:[%s1015 + $0x130] sm:$0xf]
        %v1142 = vld [vmem:[%s1015 + $0x134] sm:$0xf]
        %v1143 = vld [vmem:[%s1015 + $0x138] sm:$0xf]
        %v1144 = vld [vmem:[%s1015 + $0x13c] sm:$0xf]
        %v1145 = vld [vmem:[%s1015 + $0x140] sm:$0xf]
        %v1146 = vld [vmem:[%s1015 + $0x144] sm:$0xf]
        %v1147 = vld [vmem:[%s1015 + $0x148] sm:$0xf]
        %v1148 = vld [vmem:[%s1015 + $0x14c] sm:$0xf]
        %v1149 = vld [vmem:[%s1015 + $0x150] sm:$0xf]
        %v1150 = vld [vmem:[%s1015 + $0x154] sm:$0xf]
        %v1151 = vld [vmem:[%s1015 + $0x158] sm:$0xf]
        %v1152 = vld [vmem:[%s1015 + $0x15c] sm:$0xf]
        %v1153 = vld [vmem:[%s1015 + $0x160] sm:$0xf]
        %v1154 = vld [vmem:[%s1015 + $0x164] sm:$0xf]
        %v1155 = vld [vmem:[%s1015 + $0x168] sm:$0xf]
        %v1156 = vld [vmem:[%s1015 + $0x16c] sm:$0xf]
        %v1157 = vld [vmem:[%s1015 + $0x170] sm:$0xf]
        %v1158 = vld [vmem:[%s1015 + $0x174] sm:$0xf]
        %v1159 = vld [vmem:[%s1015 + $0x178] sm:$0xf]
        %v1160 = vld [vmem:[%s1015 + $0x17c] sm:$0xf]
        %v1161 = vld [vmem:[%s1015 + $0x180] sm:$0xf]
        %v1162 = vld [vmem:[%s1015 + $0x184] sm:$0xf]
        %v1163 = vld [vmem:[%s1015 + $0x188] sm:$0xf]
        %v1164 = vld [vmem:[%s1015 + $0x18c] sm:$0xf]
        %v1165 = vld [vmem:[%s1015 + $0x190] sm:$0xf]
        %v1166 = vld [vmem:[%s1015 + $0x194] sm:$0xf]
        %v1167 = vld [vmem:[%s1015 + $0x198] sm:$0xf]
        %v1168 = vld [vmem:[%s1015 + $0x19c] sm:$0xf]
        %v1169 = vld [vmem:[%s1015 + $0x1a0] sm:$0xf]
        %v1170 = vld [vmem:[%s1015 + $0x1a4] sm:$0xf]
        %v1171 = vld [vmem:[%s1015 + $0x1a8] sm:$0xf]
        %v1172 = vld [vmem:[%s1015 + $0x1ac] sm:$0xf]
        %v1173 = vld [vmem:[%s1015 + $0x1b0] sm:$0xf]
        %v1174 = vld [vmem:[%s1015 + $0x1b4] sm:$0xf]
        %v1175 = vld [vmem:[%s1015 + $0x1b8] sm:$0xf]
        %v1176 = vld [vmem:[%s1015 + $0x1bc] sm:$0xf]
        %v1177 = vld [vmem:[%s1015 + $0x1c0] sm:$0xf]
        %v1178 = vld [vmem:[%s1015 + $0x1c4] sm:$0xf]
        %v1179 = vld [vmem:[%s1015 + $0x1c8] sm:$0xf]
        %v1180 = vld [vmem:[%s1015 + $0x1cc] sm:$0xf]
        %v1181 = vld [vmem:[%s1015 + $0x1d0] sm:$0xf]
        %v1182 = vld [vmem:[%s1015 + $0x1d4] sm:$0xf]
        %v1183 = vld [vmem:[%s1015 + $0x1d8] sm:$0xf]
        %v1184 = vld [vmem:[%s1015 + $0x1dc] sm:$0xf]
        %v1185 = vld [vmem:[%s1015 + $0x1e0] sm:$0xf]
        %v1186 = vld [vmem:[%s1015 + $0x1e4] sm:$0xf]
        %v1187 = vld [vmem:[%s1015 + $0x1e8] sm:$0xf]
        %v1188 = vld [vmem:[%s1015 + $0x1ec] sm:$0xf]
        %v1189 = vld [vmem:[%s1015 + $0x1f0] sm:$0xf]
        %v1190 = vld [vmem:[%s1015 + $0x1f4] sm:$0xf]
        %v1191 = vld [vmem:[%s1015 + $0x1f8] sm:$0xf]
        %v1192 = vld [vmem:[%s1015 + $0x1fc] sm:$0xf]
        %v1193 = vld [vmem:[%s1015 + $0x200] sm:$0xf]
        %v1194 = vld [vmem:[%s1015 + $0x204] sm:$0xf]
        %v1195 = vld [vmem:[%s1015 + $0x208] sm:$0xf]
        %v1196 = vld [vmem:[%s1015 + $0x20c] sm:$0xf]
        %v1197 = vld [vmem:[%s1015 + $0x210] sm:$0xf]
        %v1198 = vld [vmem:[%s1015 + $0x214] sm:$0xf]
        %v1199 = vld [vmem:[%s1015 + $0x218] sm:$0xf]
        %v1200 = vld [vmem:[%s1015 + $0x21c] sm:$0xf]
        %v1201 = vld [vmem:[%s1015 + $0x220] sm:$0xf]
        %v1202 = vld [vmem:[%s1015 + $0x224] sm:$0xf]
        %v1203 = vld [vmem:[%s1015 + $0x228] sm:$0xf]
        %v1204 = vld [vmem:[%s1015 + $0x22c] sm:$0xf]
        %v1205 = vld [vmem:[%s1015 + $0x230] sm:$0xf]
        %v1206 = vld [vmem:[%s1015 + $0x234] sm:$0xf]
        %v1207 = vld [vmem:[%s1015 + $0x238] sm:$0xf]
        %v1208 = vld [vmem:[%s1015 + $0x23c] sm:$0xf]
        %v1209 = vld [vmem:[%s1015 + $0x240] sm:$0xf]
        %v1210 = vld [vmem:[%s1015 + $0x244] sm:$0xf]
        %v1211 = vld [vmem:[%s1015 + $0x248] sm:$0xf]
        %v1212 = vld [vmem:[%s1015 + $0x24c] sm:$0xf]
        %v1213 = vld [vmem:[%s1015 + $0x250] sm:$0xf]
        %v1214 = vld [vmem:[%s1015 + $0x254] sm:$0xf]
        %v1215 = vld [vmem:[%s1015 + $0x258] sm:$0xf]
        %v1216 = vld [vmem:[%s1015 + $0x25c] sm:$0xf]
        %v1217 = vld [vmem:[%s1015 + $0x260] sm:$0xf]
        %v1218 = vld [vmem:[%s1015 + $0x264] sm:$0xf]
        %v1219 = vld [vmem:[%s1015 + $0x268] sm:$0xf]
        %v1220 = vld [vmem:[%s1015 + $0x26c] sm:$0xf]
        %v1221 = vld [vmem:[%s1015 + $0x270] sm:$0xf]
        %v1222 = vld [vmem:[%s1015 + $0x274] sm:$0xf]
        %v1223 = vld [vmem:[%s1015 + $0x278] sm:$0xf]
        %v1224 = vld [vmem:[%s1015 + $0x27c] sm:$0xf]
        %v1225 = vld [vmem:[%s1015 + $0x280] sm:$0xf]
        %v1226 = vld [vmem:[%s1015 + $0x284] sm:$0xf]
        %v1227 = vld [vmem:[%s1015 + $0x288] sm:$0xf]
        %v1228 = vld [vmem:[%s1015 + $0x28c] sm:$0xf]
        %v1229 = vld [vmem:[%s1015 + $0x290] sm:$0xf]
        %v1230 = vld [vmem:[%s1015 + $0x294] sm:$0xf]
        %v1231 = vld [vmem:[%s1015 + $0x298] sm:$0xf]
        %v1232 = vld [vmem:[%s1015 + $0x29c] sm:$0xf]
        %v1233 = vld [vmem:[%s1015 + $0x2a0] sm:$0xf]
        %v1234 = vld [vmem:[%s1015 + $0x2a4] sm:$0xf]
        %v1235 = vld [vmem:[%s1015 + $0x2a8] sm:$0xf]
        %v1236 = vld [vmem:[%s1015 + $0x2ac] sm:$0xf]
        %v1237 = vld [vmem:[%s1015 + $0x2b0] sm:$0xf]
        %v1238 = vld [vmem:[%s1015 + $0x2b4] sm:$0xf]
        %v1239 = vld [vmem:[%s1015 + $0x2b8] sm:$0xf]
        %v1240 = vld [vmem:[%s1015 + $0x2bc] sm:$0xf]
        %v1241 = vld [vmem:[%s1015 + $0x2c0] sm:$0xf]
        %v1242 = vld [vmem:[%s1015 + $0x2c4] sm:$0xf]
        %v1243 = vld [vmem:[%s1015 + $0x2c8] sm:$0xf]
        %v1244 = vld [vmem:[%s1015 + $0x2cc] sm:$0xf]
        %v1245 = vld [vmem:[%s1015 + $0x2d0] sm:$0xf]
        %v1246 = vld [vmem:[%s1015 + $0x2d4] sm:$0xf]
        %v1247 = vld [vmem:[%s1015 + $0x2d8] sm:$0xf]
        %v1248 = vld [vmem:[%s1015 + $0x2dc] sm:$0xf]
        %v1249 = vld [vmem:[%s1015 + $0x2e0] sm:$0xf]
        %v1250 = vld [vmem:[%s1015 + $0x2e4] sm:$0xf]
        %v1251 = vld [vmem:[%s1015 + $0x2e8] sm:$0xf]
        %v1252 = vld [vmem:[%s1015 + $0x2ec] sm:$0xf]
        %v1253 = vld [vmem:[%s1015 + $0x2f0] sm:$0xf]
        %v1254 = vld [vmem:[%s1015 + $0x2f4] sm:$0xf]
        %v1255 = vld [vmem:[%s1015 + $0x2f8] sm:$0xf]
        %v1256 = vld [vmem:[%s1015 + $0x2fc] sm:$0xf]
        %v1257 = vld [vmem:[%s1045] sm:$0x1]
        %v1259 = vlaneseq
        %v1260 = vshrl.u32 %v1259, 7
        %v1261 = vsub.s32 0, %v1260
        %v1262 = vrot.slane %v1257, %v1261
        %v1270 = vunpack.c.l.b16 %v1059
        %v1271 = vunpack.c.h.b16 %v1059
        %v1272 = vunpack.c.l.b16 %v1060
        %v1273 = vunpack.c.h.b16 %v1060
        %v1274 = vunpack.c.l.b16 %v1061
        %v1275 = vunpack.c.h.b16 %v1061
        %v1276 = vunpack.c.l.b16 %v1062
        %v1277 = vunpack.c.h.b16 %v1062
        %v1278 = vunpack.c.l.b16 %v1063
        %v1279 = vunpack.c.h.b16 %v1063
        %v1280 = vunpack.c.l.b16 %v1064
        %v1281 = vunpack.c.h.b16 %v1064
        %v1282 = vpack.c.b16 %v1270, %v1270
        %v1283 = vpack.c.b16 %v1271, %v1271
        %v1284 = vpack.c.b16 %v1272, %v1272
        %v1285 = vpack.c.b16 %v1273, %v1273
        %v1286 = vpack.c.b16 %v1274, %v1274
        %v1287 = vpack.c.b16 %v1275, %v1275
        %v1288 = vpack.c.b16 %v1276, %v1276
        %v1289 = vpack.c.b16 %v1277, %v1277
        %v1290 = vpack.c.b16 %v1278, %v1278
        %v1291 = vpack.c.b16 %v1279, %v1279
        %v1292 = vpack.c.b16 %v1280, %v1280
        %v1293 = vpack.c.b16 %v1281, %v1281
        %v1498 = vunpack.c.l.b16 %v1065
        %v1499 = vunpack.c.l.b16 %v1066
        %v1500 = vunpack.c.l.b16 %v1067
        %v1501 = vunpack.c.l.b16 %v1068
        %v1502 = vunpack.c.l.b16 %v1069
        %v1503 = vunpack.c.l.b16 %v1070
        %v1504 = vunpack.c.l.b16 %v1071
        %v1505 = vunpack.c.l.b16 %v1072
        %v1506 = vunpack.c.l.b16 %v1073
        %v1507 = vunpack.c.l.b16 %v1074
        %v1508 = vunpack.c.l.b16 %v1075
        %v1509 = vunpack.c.l.b16 %v1076
        %v1510 = vunpack.c.l.b16 %v1077
        %v1511 = vunpack.c.l.b16 %v1078
        %v1512 = vunpack.c.l.b16 %v1079
        %v1513 = vunpack.c.l.b16 %v1080
        %v1514 = vunpack.c.l.b16 %v1081
        %v1515 = vunpack.c.l.b16 %v1082
        %v1516 = vunpack.c.l.b16 %v1083
        %v1517 = vunpack.c.l.b16 %v1084
        %v1518 = vunpack.c.l.b16 %v1085
        %v1519 = vunpack.c.l.b16 %v1086
        %v1520 = vunpack.c.l.b16 %v1087
        %v1521 = vunpack.c.l.b16 %v1088
        %v1522 = vunpack.c.l.b16 %v1089
        %v1523 = vunpack.c.l.b16 %v1090
        %v1524 = vunpack.c.l.b16 %v1091
        %v1525 = vunpack.c.l.b16 %v1092
        %v1526 = vunpack.c.l.b16 %v1093
        %v1527 = vunpack.c.l.b16 %v1094
        %v1528 = vunpack.c.l.b16 %v1095
        %v1529 = vunpack.c.l.b16 %v1096
        %v1530 = vunpack.c.l.b16 %v1097
        %v1531 = vunpack.c.l.b16 %v1098
        %v1532 = vunpack.c.l.b16 %v1099
        %v1533 = vunpack.c.l.b16 %v1100
        %v1534 = vunpack.c.l.b16 %v1101
        %v1535 = vunpack.c.l.b16 %v1102
        %v1536 = vunpack.c.l.b16 %v1103
        %v1537 = vunpack.c.l.b16 %v1104
        %v1538 = vunpack.c.l.b16 %v1105
        %v1539 = vunpack.c.l.b16 %v1106
        %v1540 = vunpack.c.l.b16 %v1107
        %v1541 = vunpack.c.l.b16 %v1108
        %v1542 = vunpack.c.l.b16 %v1109
        %v1543 = vunpack.c.l.b16 %v1110
        %v1544 = vunpack.c.l.b16 %v1111
        %v1545 = vunpack.c.l.b16 %v1112
        %v1546 = vunpack.c.l.b16 %v1113
        %v1547 = vunpack.c.l.b16 %v1114
        %v1548 = vunpack.c.l.b16 %v1115
        %v1549 = vunpack.c.l.b16 %v1116
        %v1550 = vunpack.c.l.b16 %v1117
        %v1551 = vunpack.c.l.b16 %v1118
        %v1552 = vunpack.c.l.b16 %v1119
        %v1553 = vunpack.c.l.b16 %v1120
        %v1554 = vunpack.c.l.b16 %v1121
        %v1555 = vunpack.c.l.b16 %v1122
        %v1556 = vunpack.c.l.b16 %v1123
        %v1557 = vunpack.c.l.b16 %v1124
        %v1558 = vunpack.c.l.b16 %v1125
        %v1559 = vunpack.c.l.b16 %v1126
        %v1560 = vunpack.c.l.b16 %v1127
        %v1561 = vunpack.c.l.b16 %v1128
        %v1562 = vunpack.c.l.b16 %v1129
        %v1563 = vunpack.c.l.b16 %v1130
        %v1564 = vunpack.c.l.b16 %v1131
        %v1565 = vunpack.c.l.b16 %v1132
        %v1566 = vunpack.c.l.b16 %v1133
        %v1567 = vunpack.c.l.b16 %v1134
        %v1568 = vunpack.c.l.b16 %v1135
        %v1569 = vunpack.c.l.b16 %v1136
        %v1570 = vunpack.c.l.b16 %v1137
        %v1571 = vunpack.c.l.b16 %v1138
        %v1572 = vunpack.c.l.b16 %v1139
        %v1573 = vunpack.c.l.b16 %v1140
        %v1574 = vunpack.c.l.b16 %v1141
        %v1575 = vunpack.c.l.b16 %v1142
        %v1576 = vunpack.c.l.b16 %v1143
        %v1577 = vunpack.c.l.b16 %v1144
        %v1578 = vunpack.c.l.b16 %v1145
        %v1579 = vunpack.c.l.b16 %v1146
        %v1580 = vunpack.c.l.b16 %v1147
        %v1581 = vunpack.c.l.b16 %v1148
        %v1582 = vunpack.c.l.b16 %v1149
        %v1583 = vunpack.c.l.b16 %v1150
        %v1584 = vunpack.c.l.b16 %v1151
        %v1585 = vunpack.c.l.b16 %v1152
        %v1586 = vunpack.c.l.b16 %v1153
        %v1587 = vunpack.c.l.b16 %v1154
        %v1588 = vunpack.c.l.b16 %v1155
        %v1589 = vunpack.c.l.b16 %v1156
        %v1590 = vunpack.c.l.b16 %v1157
        %v1591 = vunpack.c.l.b16 %v1158
        %v1592 = vunpack.c.l.b16 %v1159
        %v1593 = vunpack.c.l.b16 %v1160
        %v1594 = vunpack.c.l.b16 %v1161
        %v1595 = vunpack.c.l.b16 %v1162
        %v1596 = vunpack.c.l.b16 %v1163
        %v1597 = vunpack.c.l.b16 %v1164
        %v1598 = vunpack.c.l.b16 %v1165
        %v1599 = vunpack.c.l.b16 %v1166
        %v1600 = vunpack.c.l.b16 %v1167
        %v1601 = vunpack.c.l.b16 %v1168
        %v1602 = vunpack.c.l.b16 %v1169
        %v1603 = vunpack.c.l.b16 %v1170
        %v1604 = vunpack.c.l.b16 %v1171
        %v1605 = vunpack.c.l.b16 %v1172
        %v1606 = vunpack.c.l.b16 %v1173
        %v1607 = vunpack.c.l.b16 %v1174
        %v1608 = vunpack.c.l.b16 %v1175
        %v1609 = vunpack.c.l.b16 %v1176
        %v1610 = vunpack.c.l.b16 %v1177
        %v1611 = vunpack.c.l.b16 %v1178
        %v1612 = vunpack.c.l.b16 %v1179
        %v1613 = vunpack.c.l.b16 %v1180
        %v1614 = vunpack.c.l.b16 %v1181
        %v1615 = vunpack.c.l.b16 %v1182
        %v1616 = vunpack.c.l.b16 %v1183
        %v1617 = vunpack.c.l.b16 %v1184
        %v1618 = vunpack.c.l.b16 %v1185
        %v1619 = vunpack.c.l.b16 %v1186
        %v1620 = vunpack.c.l.b16 %v1187
        %v1621 = vunpack.c.l.b16 %v1188
        %v1622 = vunpack.c.l.b16 %v1189
        %v1623 = vunpack.c.l.b16 %v1190
        %v1624 = vunpack.c.l.b16 %v1191
        %v1625 = vunpack.c.l.b16 %v1192
        %v1626 = vunpack.c.l.b16 %v1193
        %v1627 = vunpack.c.l.b16 %v1194
        %v1628 = vunpack.c.l.b16 %v1195
        %v1629 = vunpack.c.l.b16 %v1196
        %v1630 = vunpack.c.l.b16 %v1197
        %v1631 = vunpack.c.l.b16 %v1198
        %v1632 = vunpack.c.l.b16 %v1199
        %v1633 = vunpack.c.l.b16 %v1200
        %v1634 = vunpack.c.l.b16 %v1201
        %v1635 = vunpack.c.l.b16 %v1202
        %v1636 = vunpack.c.l.b16 %v1203
        %v1637 = vunpack.c.l.b16 %v1204
        %v1638 = vunpack.c.l.b16 %v1205
        %v1639 = vunpack.c.l.b16 %v1206
        %v1640 = vunpack.c.l.b16 %v1207
        %v1641 = vunpack.c.l.b16 %v1208
        %v1642 = vunpack.c.l.b16 %v1209
        %v1643 = vunpack.c.l.b16 %v1210
        %v1644 = vunpack.c.l.b16 %v1211
        %v1645 = vunpack.c.l.b16 %v1212
        %v1646 = vunpack.c.l.b16 %v1213
        %v1647 = vunpack.c.l.b16 %v1214
        %v1648 = vunpack.c.l.b16 %v1215
        %v1649 = vunpack.c.l.b16 %v1216
        %v1650 = vunpack.c.l.b16 %v1217
        %v1651 = vunpack.c.l.b16 %v1218
        %v1652 = vunpack.c.l.b16 %v1219
        %v1653 = vunpack.c.l.b16 %v1220
        %v1654 = vunpack.c.l.b16 %v1221
        %v1655 = vunpack.c.l.b16 %v1222
        %v1656 = vunpack.c.l.b16 %v1223
        %v1657 = vunpack.c.l.b16 %v1224
        %v1658 = vunpack.c.l.b16 %v1225
        %v1659 = vunpack.c.l.b16 %v1226
        %v1660 = vunpack.c.l.b16 %v1227
        %v1661 = vunpack.c.l.b16 %v1228
        %v1662 = vunpack.c.l.b16 %v1229
        %v1663 = vunpack.c.l.b16 %v1230
        %v1664 = vunpack.c.l.b16 %v1231
        %v1665 = vunpack.c.l.b16 %v1232
        %v1666 = vunpack.c.l.b16 %v1233
        %v1667 = vunpack.c.l.b16 %v1234
        %v1668 = vunpack.c.l.b16 %v1235
        %v1669 = vunpack.c.l.b16 %v1236
        %v1670 = vunpack.c.l.b16 %v1237
        %v1671 = vunpack.c.l.b16 %v1238
        %v1672 = vunpack.c.l.b16 %v1239
        %v1673 = vunpack.c.l.b16 %v1240
        %v1674 = vunpack.c.l.b16 %v1241
        %v1675 = vunpack.c.l.b16 %v1242
        %v1676 = vunpack.c.l.b16 %v1243
        %v1677 = vunpack.c.l.b16 %v1244
        %v1678 = vunpack.c.l.b16 %v1245
        %v1679 = vunpack.c.l.b16 %v1246
        %v1680 = vunpack.c.l.b16 %v1247
        %v1681 = vunpack.c.l.b16 %v1248
        %v1682 = vunpack.c.l.b16 %v1249
        %v1683 = vunpack.c.l.b16 %v1250
        %v1684 = vunpack.c.l.b16 %v1251
        %v1685 = vunpack.c.l.b16 %v1252
        %v1686 = vunpack.c.l.b16 %v1253
        %v1687 = vunpack.c.l.b16 %v1254
        %v1688 = vunpack.c.l.b16 %v1255
        %v1689 = vunpack.c.l.b16 %v1256
        %v1690 = vpack.c.b16 %v1499, %v1498
        %v1691 = vpack.c.b16 %v1501, %v1500
        %v1692 = vpack.c.b16 %v1503, %v1502
        %v1693 = vpack.c.b16 %v1505, %v1504
        %v1694 = vpack.c.b16 %v1507, %v1506
        %v1695 = vpack.c.b16 %v1509, %v1508
        %v1696 = vpack.c.b16 %v1511, %v1510
        %v1697 = vpack.c.b16 %v1513, %v1512
        %v1698 = vpack.c.b16 %v1515, %v1514
        %v1699 = vpack.c.b16 %v1517, %v1516
        %v1700 = vpack.c.b16 %v1519, %v1518
        %v1701 = vpack.c.b16 %v1521, %v1520
        %v1702 = vpack.c.b16 %v1523, %v1522
        %v1703 = vpack.c.b16 %v1525, %v1524
        %v1704 = vpack.c.b16 %v1527, %v1526
        %v1705 = vpack.c.b16 %v1529, %v1528
        %v1706 = vpack.c.b16 %v1531, %v1530
        %v1707 = vpack.c.b16 %v1533, %v1532
        %v1708 = vpack.c.b16 %v1535, %v1534
        %v1709 = vpack.c.b16 %v1537, %v1536
        %v1710 = vpack.c.b16 %v1539, %v1538
        %v1711 = vpack.c.b16 %v1541, %v1540
        %v1712 = vpack.c.b16 %v1543, %v1542
        %v1713 = vpack.c.b16 %v1545, %v1544
        %v1714 = vpack.c.b16 %v1547, %v1546
        %v1715 = vpack.c.b16 %v1549, %v1548
        %v1716 = vpack.c.b16 %v1551, %v1550
        %v1717 = vpack.c.b16 %v1553, %v1552
        %v1718 = vpack.c.b16 %v1555, %v1554
        %v1719 = vpack.c.b16 %v1557, %v1556
        %v1720 = vpack.c.b16 %v1559, %v1558
        %v1721 = vpack.c.b16 %v1561, %v1560
        %v1722 = vpack.c.b16 %v1563, %v1562
        %v1723 = vpack.c.b16 %v1565, %v1564
        %v1724 = vpack.c.b16 %v1567, %v1566
        %v1725 = vpack.c.b16 %v1569, %v1568
        %v1726 = vpack.c.b16 %v1571, %v1570
        %v1727 = vpack.c.b16 %v1573, %v1572
        %v1728 = vpack.c.b16 %v1575, %v1574
        %v1729 = vpack.c.b16 %v1577, %v1576
        %v1730 = vpack.c.b16 %v1579, %v1578
        %v1731 = vpack.c.b16 %v1581, %v1580
        %v1732 = vpack.c.b16 %v1583, %v1582
        %v1733 = vpack.c.b16 %v1585, %v1584
        %v1734 = vpack.c.b16 %v1587, %v1586
        %v1735 = vpack.c.b16 %v1589, %v1588
        %v1736 = vpack.c.b16 %v1591, %v1590
        %v1737 = vpack.c.b16 %v1593, %v1592
        %v1738 = vpack.c.b16 %v1595, %v1594
        %v1739 = vpack.c.b16 %v1597, %v1596
        %v1740 = vpack.c.b16 %v1599, %v1598
        %v1741 = vpack.c.b16 %v1601, %v1600
        %v1742 = vpack.c.b16 %v1603, %v1602
        %v1743 = vpack.c.b16 %v1605, %v1604
        %v1744 = vpack.c.b16 %v1607, %v1606
        %v1745 = vpack.c.b16 %v1609, %v1608
        %v1746 = vpack.c.b16 %v1611, %v1610
        %v1747 = vpack.c.b16 %v1613, %v1612
        %v1748 = vpack.c.b16 %v1615, %v1614
        %v1749 = vpack.c.b16 %v1617, %v1616
        %v1750 = vpack.c.b16 %v1619, %v1618
        %v1751 = vpack.c.b16 %v1621, %v1620
        %v1752 = vpack.c.b16 %v1623, %v1622
        %v1753 = vpack.c.b16 %v1625, %v1624
        %v1754 = vpack.c.b16 %v1627, %v1626
        %v1755 = vpack.c.b16 %v1629, %v1628
        %v1756 = vpack.c.b16 %v1631, %v1630
        %v1757 = vpack.c.b16 %v1633, %v1632
        %v1758 = vpack.c.b16 %v1635, %v1634
        %v1759 = vpack.c.b16 %v1637, %v1636
        %v1760 = vpack.c.b16 %v1639, %v1638
        %v1761 = vpack.c.b16 %v1641, %v1640
        %v1762 = vpack.c.b16 %v1643, %v1642
        %v1763 = vpack.c.b16 %v1645, %v1644
        %v1764 = vpack.c.b16 %v1647, %v1646
        %v1765 = vpack.c.b16 %v1649, %v1648
        %v1766 = vpack.c.b16 %v1651, %v1650
        %v1767 = vpack.c.b16 %v1653, %v1652
        %v1768 = vpack.c.b16 %v1655, %v1654
        %v1769 = vpack.c.b16 %v1657, %v1656
        %v1770 = vpack.c.b16 %v1659, %v1658
        %v1771 = vpack.c.b16 %v1661, %v1660
        %v1772 = vpack.c.b16 %v1663, %v1662
        %v1773 = vpack.c.b16 %v1665, %v1664
        %v1774 = vpack.c.b16 %v1667, %v1666
        %v1775 = vpack.c.b16 %v1669, %v1668
        %v1776 = vpack.c.b16 %v1671, %v1670
        %v1777 = vpack.c.b16 %v1673, %v1672
        %v1778 = vpack.c.b16 %v1675, %v1674
        %v1779 = vpack.c.b16 %v1677, %v1676
        %v1780 = vpack.c.b16 %v1679, %v1678
        %v1781 = vpack.c.b16 %v1681, %v1680
        %v1782 = vpack.c.b16 %v1683, %v1682
        %v1783 = vpack.c.b16 %v1685, %v1684
        %v1784 = vpack.c.b16 %v1687, %v1686
        %v1785 = vpack.c.b16 %v1689, %v1688
        %1882 = vmatprep.subr.bf16.mxu0 0
        %1883 = vmatpush1.bf16.msra.mxu0 %v1690
        %1884 = vmatprep.subr.bf16.mxu0 0
        %1885 = vmatpush1.bf16.msra.mxu0 %v1691
        %1886 = vmatprep.subr.bf16.mxu0 0
        %1887 = vmatpush1.bf16.msra.mxu0 %v1692
        %1888 = vmatprep.subr.bf16.mxu0 0
        %1889 = vmatpush1.bf16.msra.mxu0 %v1693
        %1890 = vmatprep.subr.bf16.mxu0 0
        %1891 = vmatpush1.bf16.msra.mxu0 %v1694
        %1892 = vmatprep.subr.bf16.mxu0 0
        %1893 = vmatpush1.bf16.msra.mxu0 %v1695
        %1894 = vmatprep.subr.bf16.mxu0 0
        %1895 = vmatpush1.bf16.msra.mxu0 %v1696
        %1896 = vmatprep.subr.bf16.mxu0 0
        %1897 = vmatpush1.bf16.msra.mxu0 %v1697
        %1898 = vmatprep.subr.bf16.mxu0 0
        %1899 = vmatpush1.bf16.msra.mxu0 %v1698
        %1900 = vmatprep.subr.bf16.mxu0 0
        %1901 = vmatpush1.bf16.msra.mxu0 %v1699
        %1902 = vmatprep.subr.bf16.mxu0 0
        %1903 = vmatpush1.bf16.msra.mxu0 %v1700
        %1904 = vmatprep.subr.bf16.mxu0 0
        %1905 = vmatpush1.bf16.msra.mxu0 %v1701
        %1906 = vmatprep.subr.bf16.mxu0 0
        %1907 = vmatpush1.bf16.msra.mxu0 %v1702
        %1908 = vmatprep.subr.bf16.mxu0 0
        %1909 = vmatpush1.bf16.msra.mxu0 %v1703
        %1910 = vmatprep.subr.bf16.mxu0 0
        %1911 = vmatpush1.bf16.msra.mxu0 %v1704
        %1912 = vmatprep.subr.bf16.mxu0 0
        %1913 = vmatpush1.bf16.msra.mxu0 %v1705
        %1914 = vmatprep.mubr.bf16.mxu0 %v1283
        %1915 = vmatmul.mubr.bf16.gmra.mrb[0].mxu0 %v1282
        %v1916 = vpop.f32.mrb[0].mxu0
        %v1917 = vadd.f32 %v1262, %v1916
        %v1918 = vpop.f32.mrb[0].mxu0
        %v1919 = vpop.f32.mrb[0].mxu0
        %v1920 = vpop.f32.mrb[0].mxu0
        %1921 = vdwg.mxu0
        %1922 = vmatprep.subr.bf16.mxu0 0
        %1923 = vmatpush1.bf16.msra.mxu0 %v1706
        %1924 = vmatprep.subr.bf16.mxu0 0
        %1925 = vmatpush1.bf16.msra.mxu0 %v1707
        %1926 = vmatprep.subr.bf16.mxu0 0
        %1927 = vmatpush1.bf16.msra.mxu0 %v1708
        %1928 = vmatprep.subr.bf16.mxu0 0
        %1929 = vmatpush1.bf16.msra.mxu0 %v1709
        %1930 = vmatprep.subr.bf16.mxu0 0
        %1931 = vmatpush1.bf16.msra.mxu0 %v1710
        %1932 = vmatprep.subr.bf16.mxu0 0
        %1933 = vmatpush1.bf16.msra.mxu0 %v1711
        %1934 = vmatprep.subr.bf16.mxu0 0
        %1935 = vmatpush1.bf16.msra.mxu0 %v1712
        %1936 = vmatprep.subr.bf16.mxu0 0
        %1937 = vmatpush1.bf16.msra.mxu0 %v1713
        %1938 = vmatprep.subr.bf16.mxu0 0
        %1939 = vmatpush1.bf16.msra.mxu0 %v1714
        %1940 = vmatprep.subr.bf16.mxu0 0
        %1941 = vmatpush1.bf16.msra.mxu0 %v1715
        %1942 = vmatprep.subr.bf16.mxu0 0
        %1943 = vmatpush1.bf16.msra.mxu0 %v1716
        %1944 = vmatprep.subr.bf16.mxu0 0
        %1945 = vmatpush1.bf16.msra.mxu0 %v1717
        %1946 = vmatprep.subr.bf16.mxu0 0
        %1947 = vmatpush1.bf16.msra.mxu0 %v1718
        %1948 = vmatprep.subr.bf16.mxu0 0
        %1949 = vmatpush1.bf16.msra.mxu0 %v1719
        %1950 = vmatprep.subr.bf16.mxu0 0
        %1951 = vmatpush1.bf16.msra.mxu0 %v1720
        %1952 = vmatprep.subr.bf16.mxu0 0
        %1953 = vmatpush1.bf16.msra.mxu0 %v1721
        %1954 = vmatprep.mubr.bf16.mxu0 %v1285
        %1955 = vmatmul.mubr.bf16.gmra.mrb[0].mxu0 %v1284
        %v1956 = vpop.f32.mrb[0].mxu0
        %v1957 = vadd.f32 %v1917, %v1956
        %v1958 = vpop.f32.mrb[0].mxu0
        %v1959 = vpop.f32.mrb[0].mxu0
        %v1960 = vpop.f32.mrb[0].mxu0
        %1961 = vdwg.mxu0
        %1962 = vmatprep.subr.bf16.mxu0 0
        %1963 = vmatpush1.bf16.msra.mxu0 %v1722
        %1964 = vmatprep.subr.bf16.mxu0 0
        %1965 = vmatpush1.bf16.msra.mxu0 %v1723
        %1966 = vmatprep.subr.bf16.mxu0 0
        %1967 = vmatpush1.bf16.msra.mxu0 %v1724
        %1968 = vmatprep.subr.bf16.mxu0 0
        %1969 = vmatpush1.bf16.msra.mxu0 %v1725
        %1970 = vmatprep.subr.bf16.mxu0 0
        %1971 = vmatpush1.bf16.msra.mxu0 %v1726
        %1972 = vmatprep.subr.bf16.mxu0 0
        %1973 = vmatpush1.bf16.msra.mxu0 %v1727
        %1974 = vmatprep.subr.bf16.mxu0 0
        %1975 = vmatpush1.bf16.msra.mxu0 %v1728
        %1976 = vmatprep.subr.bf16.mxu0 0
        %1977 = vmatpush1.bf16.msra.mxu0 %v1729
        %1978 = vmatprep.subr.bf16.mxu0 0
        %1979 = vmatpush1.bf16.msra.mxu0 %v1730
        %1980 = vmatprep.subr.bf16.mxu0 0
        %1981 = vmatpush1.bf16.msra.mxu0 %v1731
        %1982 = vmatprep.subr.bf16.mxu0 0
        %1983 = vmatpush1.bf16.msra.mxu0 %v1732
        %1984 = vmatprep.subr.bf16.mxu0 0
        %1985 = vmatpush1.bf16.msra.mxu0 %v1733
        %1986 = vmatprep.subr.bf16.mxu0 0
        %1987 = vmatpush1.bf16.msra.mxu0 %v1734
        %1988 = vmatprep.subr.bf16.mxu0 0
        %1989 = vmatpush1.bf16.msra.mxu0 %v1735
        %1990 = vmatprep.subr.bf16.mxu0 0
        %1991 = vmatpush1.bf16.msra.mxu0 %v1736
        %1992 = vmatprep.subr.bf16.mxu0 0
        %1993 = vmatpush1.bf16.msra.mxu0 %v1737
        %1994 = vmatprep.mubr.bf16.mxu0 %v1287
        %1995 = vmatmul.mubr.bf16.gmra.mrb[0].mxu0 %v1286
        %v1996 = vpop.f32.mrb[0].mxu0
        %v1997 = vadd.f32 %v1957, %v1996
        %v1998 = vpop.f32.mrb[0].mxu0
        %v1999 = vpop.f32.mrb[0].mxu0
        %v2000 = vpop.f32.mrb[0].mxu0
        %2001 = vdwg.mxu0
        %2002 = vmatprep.subr.bf16.mxu0 0
        %2003 = vmatpush1.bf16.msra.mxu0 %v1738
        %2004 = vmatprep.subr.bf16.mxu0 0
        %2005 = vmatpush1.bf16.msra.mxu0 %v1739
        %2006 = vmatprep.subr.bf16.mxu0 0
        %2007 = vmatpush1.bf16.msra.mxu0 %v1740
        %2008 = vmatprep.subr.bf16.mxu0 0
        %2009 = vmatpush1.bf16.msra.mxu0 %v1741
        %2010 = vmatprep.subr.bf16.mxu0 0
        %2011 = vmatpush1.bf16.msra.mxu0 %v1742
        %2012 = vmatprep.subr.bf16.mxu0 0
        %2013 = vmatpush1.bf16.msra.mxu0 %v1743
        %2014 = vmatprep.subr.bf16.mxu0 0
        %2015 = vmatpush1.bf16.msra.mxu0 %v1744
        %2016 = vmatprep.subr.bf16.mxu0 0
        %2017 = vmatpush1.bf16.msra.mxu0 %v1745
        %2018 = vmatprep.subr.bf16.mxu0 0
        %2019 = vmatpush1.bf16.msra.mxu0 %v1746
        %2020 = vmatprep.subr.bf16.mxu0 0
        %2021 = vmatpush1.bf16.msra.mxu0 %v1747
        %2022 = vmatprep.subr.bf16.mxu0 0
        %2023 = vmatpush1.bf16.msra.mxu0 %v1748
        %2024 = vmatprep.subr.bf16.mxu0 0
        %2025 = vmatpush1.bf16.msra.mxu0 %v1749
        %2026 = vmatprep.subr.bf16.mxu0 0
        %2027 = vmatpush1.bf16.msra.mxu0 %v1750
        %2028 = vmatprep.subr.bf16.mxu0 0
        %2029 = vmatpush1.bf16.msra.mxu0 %v1751
        %2030 = vmatprep.subr.bf16.mxu0 0
        %2031 = vmatpush1.bf16.msra.mxu0 %v1752
        %2032 = vmatprep.subr.bf16.mxu0 0
        %2033 = vmatpush1.bf16.msra.mxu0 %v1753
        %2034 = vmatprep.mubr.bf16.mxu0 %v1289
        %2035 = vmatmul.mubr.bf16.gmra.mrb[0].mxu0 %v1288
        %v2036 = vpop.f32.mrb[0].mxu0
        %v2037 = vadd.f32 %v1997, %v2036
        %v2038 = vpop.f32.mrb[0].mxu0
        %v2039 = vpop.f32.mrb[0].mxu0
        %v2040 = vpop.f32.mrb[0].mxu0
        %2041 = vdwg.mxu0
        %2042 = vmatprep.subr.bf16.mxu0 0
        %2043 = vmatpush1.bf16.msra.mxu0 %v1754
        %2044 = vmatprep.subr.bf16.mxu0 0
        %2045 = vmatpush1.bf16.msra.mxu0 %v1755
        %2046 = vmatprep.subr.bf16.mxu0 0
        %2047 = vmatpush1.bf16.msra.mxu0 %v1756
        %2048 = vmatprep.subr.bf16.mxu0 0
        %2049 = vmatpush1.bf16.msra.mxu0 %v1757
        %2050 = vmatprep.subr.bf16.mxu0 0
        %2051 = vmatpush1.bf16.msra.mxu0 %v1758
        %2052 = vmatprep.subr.bf16.mxu0 0
        %2053 = vmatpush1.bf16.msra.mxu0 %v1759
        %2054 = vmatprep.subr.bf16.mxu0 0
        %2055 = vmatpush1.bf16.msra.mxu0 %v1760
        %2056 = vmatprep.subr.bf16.mxu0 0
        %2057 = vmatpush1.bf16.msra.mxu0 %v1761
        %2058 = vmatprep.subr.bf16.mxu0 0
        %2059 = vmatpush1.bf16.msra.mxu0 %v1762
        %2060 = vmatprep.subr.bf16.mxu0 0
        %2061 = vmatpush1.bf16.msra.mxu0 %v1763
        %2062 = vmatprep.subr.bf16.mxu0 0
        %2063 = vmatpush1.bf16.msra.mxu0 %v1764
        %2064 = vmatprep.subr.bf16.mxu0 0
        %2065 = vmatpush1.bf16.msra.mxu0 %v1765
        %2066 = vmatprep.subr.bf16.mxu0 0
        %2067 = vmatpush1.bf16.msra.mxu0 %v1766
        %2068 = vmatprep.subr.bf16.mxu0 0
        %2069 = vmatpush1.bf16.msra.mxu0 %v1767
        %2070 = vmatprep.subr.bf16.mxu0 0
        %2071 = vmatpush1.bf16.msra.mxu0 %v1768
        %2072 = vmatprep.subr.bf16.mxu0 0
        %2073 = vmatpush1.bf16.msra.mxu0 %v1769
        %2074 = vmatprep.mubr.bf16.mxu0 %v1291
        %2075 = vmatmul.mubr.bf16.gmra.mrb[0].mxu0 %v1290
        %v2076 = vpop.f32.mrb[0].mxu0
        %v2077 = vadd.f32 %v2037, %v2076
        %v2078 = vpop.f32.mrb[0].mxu0
        %v2079 = vpop.f32.mrb[0].mxu0
        %v2080 = vpop.f32.mrb[0].mxu0
        %2081 = vdwg.mxu0
        %2082 = vmatprep.subr.bf16.mxu0 0
        %2083 = vmatpush1.bf16.msra.mxu0 %v1770
        %2084 = vmatprep.subr.bf16.mxu0 0
        %2085 = vmatpush1.bf16.msra.mxu0 %v1771
        %2086 = vmatprep.subr.bf16.mxu0 0
        %2087 = vmatpush1.bf16.msra.mxu0 %v1772
        %2088 = vmatprep.subr.bf16.mxu0 0
        %2089 = vmatpush1.bf16.msra.mxu0 %v1773
        %2090 = vmatprep.subr.bf16.mxu0 0
        %2091 = vmatpush1.bf16.msra.mxu0 %v1774
        %2092 = vmatprep.subr.bf16.mxu0 0
        %2093 = vmatpush1.bf16.msra.mxu0 %v1775
        %2094 = vmatprep.subr.bf16.mxu0 0
        %2095 = vmatpush1.bf16.msra.mxu0 %v1776
        %2096 = vmatprep.subr.bf16.mxu0 0
        %2097 = vmatpush1.bf16.msra.mxu0 %v1777
        %2098 = vmatprep.subr.bf16.mxu0 0
        %2099 = vmatpush1.bf16.msra.mxu0 %v1778
        %2100 = vmatprep.subr.bf16.mxu0 0
        %2101 = vmatpush1.bf16.msra.mxu0 %v1779
        %2102 = vmatprep.subr.bf16.mxu0 0
        %2103 = vmatpush1.bf16.msra.mxu0 %v1780
        %2104 = vmatprep.subr.bf16.mxu0 0
        %2105 = vmatpush1.bf16.msra.mxu0 %v1781
        %2106 = vmatprep.subr.bf16.mxu0 0
        %2107 = vmatpush1.bf16.msra.mxu0 %v1782
        %2108 = vmatprep.subr.bf16.mxu0 0
        %2109 = vmatpush1.bf16.msra.mxu0 %v1783
        %2110 = vmatprep.subr.bf16.mxu0 0
        %2111 = vmatpush1.bf16.msra.mxu0 %v1784
        %2112 = vmatprep.subr.bf16.mxu0 0
        %2113 = vmatpush1.bf16.msra.mxu0 %v1785
        %2114 = vmatprep.mubr.bf16.mxu0 %v1293
        %2115 = vmatmul.mubr.bf16.gmra.mrb[0].mxu0 %v1292
        %v2116 = vpop.f32.mrb[0].mxu0
        %v2117 = vadd.f32 %v2077, %v2116
        %v2118 = vpop.f32.mrb[0].mxu0
        %v2119 = vpop.f32.mrb[0].mxu0
        %v2120 = vpop.f32.mrb[0].mxu0
        %2121 = vdwg.mxu0
        %v2122 = vmax.f32 %v2117, 0.0
        %v2123 = vld [vmem:[#allocation2] sm:$0xff]
        %v2124 = vpack.c.bf16 %v2122, %v2122
        %v2125 = vld [vmem:[%s1050] sm:$0xf]
        %v2126 = vld [vmem:[%s1050 + $0x4] sm:$0xf]
        %v2127 = vld [vmem:[%s1050 + $0x8] sm:$0xf]
        %v2128 = vld [vmem:[%s1050 + $0xc] sm:$0xf]
        %v2129 = vld [vmem:[%s1050 + $0x10] sm:$0xf]
        %v2130 = vld [vmem:[%s1050 + $0x14] sm:$0xf]
        %v2131 = vld [vmem:[%s1050 + $0x18] sm:$0xf]
        %v2132 = vld [vmem:[%s1050 + $0x1c] sm:$0xf]
        %v2133 = vld [vmem:[%s1050 + $0x20] sm:$0xf]
        %v2134 = vld [vmem:[%s1050 + $0x24] sm:$0xf]
        %v2135 = vld [vmem:[%s1050 + $0x28] sm:$0xf]
        %v2136 = vld [vmem:[%s1050 + $0x2c] sm:$0xf]
        %v2137 = vld [vmem:[%s1050 + $0x30] sm:$0xf]
        %v2138 = vld [vmem:[%s1050 + $0x34] sm:$0xf]
        %v2139 = vld [vmem:[%s1050 + $0x38] sm:$0xf]
        %v2140 = vld [vmem:[%s1050 + $0x3c] sm:$0xf]
        %v2157 = vunpack.c.l.b16 %v2125
        %v2158 = vunpack.c.l.b16 %v2126
        %v2159 = vunpack.c.l.b16 %v2127
        %v2160 = vunpack.c.l.b16 %v2128
        %v2161 = vunpack.c.l.b16 %v2129
        %v2162 = vunpack.c.l.b16 %v2130
        %v2163 = vunpack.c.l.b16 %v2131
        %v2164 = vunpack.c.l.b16 %v2132
        %v2165 = vunpack.c.l.b16 %v2133
        %v2166 = vunpack.c.l.b16 %v2134
        %v2167 = vunpack.c.l.b16 %v2135
        %v2168 = vunpack.c.l.b16 %v2136
        %v2169 = vunpack.c.l.b16 %v2137
        %v2170 = vunpack.c.l.b16 %v2138
        %v2171 = vunpack.c.l.b16 %v2139
        %v2172 = vunpack.c.l.b16 %v2140
        %v2173 = vpack.c.b16 %v2158, %v2157
        %v2174 = vpack.c.b16 %v2160, %v2159
        %v2175 = vpack.c.b16 %v2162, %v2161
        %v2176 = vpack.c.b16 %v2164, %v2163
        %v2177 = vpack.c.b16 %v2166, %v2165
        %v2178 = vpack.c.b16 %v2168, %v2167
        %v2179 = vpack.c.b16 %v2170, %v2169
        %v2180 = vpack.c.b16 %v2172, %v2171
        %2189 = vmatprep.subr.bf16.mxu0 0
        %2190 = vmatpush1.bf16.msra.mxu0 %v2173
        %2191 = vmatprep.subr.bf16.mxu0 0
        %2192 = vmatpush1.bf16.msra.mxu0 %v2174
        %2193 = vmatprep.subr.bf16.mxu0 0
        %2194 = vmatpush1.bf16.msra.mxu0 %v2175
        %2195 = vmatprep.subr.bf16.mxu0 0
        %2196 = vmatpush1.bf16.msra.mxu0 %v2176
        %2197 = vmatprep.subr.bf16.mxu0 0
        %2198 = vmatpush1.bf16.msra.mxu0 %v2177
        %2199 = vmatprep.subr.bf16.mxu0 0
        %2200 = vmatpush1.bf16.msra.mxu0 %v2178
        %2201 = vmatprep.subr.bf16.mxu0 0
        %2202 = vmatpush1.bf16.msra.mxu0 %v2179
        %2203 = vmatprep.subr.bf16.mxu0 0
        %2204 = vmatpush1.bf16.msra.mxu0 %v2180
        %2205 = vmatprep.subr.bf16.mxu0 0
        %2206 = vmatpush1.bf16.msra.mxu0 0
        %2207 = vmatprep.subr.bf16.mxu0 0
        %2208 = vmatpush1.bf16.msra.mxu0 0
        %2209 = vmatprep.subr.bf16.mxu0 0
        %2210 = vmatpush1.bf16.msra.mxu0 0
        %2211 = vmatprep.subr.bf16.mxu0 0
        %2212 = vmatpush1.bf16.msra.mxu0 0
        %2213 = vmatprep.subr.bf16.mxu0 0
        %2214 = vmatpush1.bf16.msra.mxu0 0
        %2215 = vmatprep.subr.bf16.mxu0 0
        %2216 = vmatpush1.bf16.msra.mxu0 0
        %2217 = vmatprep.subr.bf16.mxu0 0
        %2218 = vmatpush1.bf16.msra.mxu0 0
        %2219 = vmatprep.subr.bf16.mxu0 0
        %2220 = vmatpush1.bf16.msra.mxu0 0
        %2221 = vmatprep.mubr.bf16.mxu0 0
        %2222 = vmatmul.mubr.bf16.gmra.mrb[0].mxu0 %v2124
        %v2223 = vpop.f32.mrb[0].mxu0
        %v2224 = vadd.f32 0.0, %v2223
        %v2225 = vpop.f32.mrb[0].mxu0
        %v2226 = vpop.f32.mrb[0].mxu0
        %v2227 = vpop.f32.mrb[0].mxu0
        %2228 = vdwg.mxu0
        %v2229 = vadd.f32 %v2123, %v2224
        %vm2230 = vcmask 261120
        %2231 = vst.msk [vmem:[#allocation2] sm:$0xff] %vm2230, %v2229
        %p2232 = scmp.eq.s32.totalorder %s17, 3
        // Predicated region
        $region86: #{drug_mixedfp_forward.1} parent=76 // pred_check
          %p2233 = pneg %p2232
        $region87: #{drug_mixedfp_forward.1} parent=76 // pred_check_branch
          %2235 = sbr.rel (%p2233) target = $region89
        $region88: #{drug_mixedfp_forward.1} parent=76 // pred_region
          %v2236 = vld [vmem:[#allocation2] sm:$0xff]
          %v2237 = vld [vmem:[%s4] sm:$0x1]
          %v2239 = vlaneseq
          %v2240 = vshrl.u32 %v2239, 7
          %v2241 = vsub.s32 0, %v2240
          %v2242 = vrot.slane %v2237, %v2241
          %v2244 = vadd.f32 %v2236, %v2242
          %2245 = vst.msk [vmem:[#allocation4] sm:$0xff] %vm2230, %v2244
        $region89: #{drug_mixedfp_forward.1} parent=76 // pred_fallthru
          _
        // Predicated region
        $region90: #{drug_mixedfp_forward.1} parent=76 // pred_check
          %p2246 = pneg %p150
        $region91: #{drug_mixedfp_forward.1} parent=76 // pred_check_branch
          %2248 = sbr.rel (%p2246) target = $region93
        $region92: #{drug_mixedfp_forward.1} parent=76 // pred_region
          %s2250 = ssub.s32 128, 128
          %2251 = vsyncadd [#allocation5], %s2250
          %s2253 = sshll.u32 [#allocation4], 4
          %s2254 = int_to_ptr.vmem [resolvable:$true] %s2253
          %2256 = dma.vmem_to_hbm [thread:$0]  %s2254, 128, %s5, [#allocation5]
        $region93: #{drug_mixedfp_forward.1} parent=76 // pred_fallthru
          _
        // Predicated region
        $region94: #{drug_mixedfp_forward.1} parent=76 // pred_check
          %p2257 = pneg %p150
        $region95: #{drug_mixedfp_forward.1} parent=76 // pred_check_branch
          %2259 = sbr.rel (%p2257) target = $region97
        $region96: #{drug_mixedfp_forward.1} parent=76 // pred_region
          %2260 = dma.done [#allocation5], 128
        $region97: #{drug_mixedfp_forward.1} parent=76 // pred_fallthru
          _
      $region77: #{drug_mixedfp_forward.1} parent=5 // pred_fallthru
        _
      %p2261 = scmp.le.s32.totalorder 2, %s12
      // Predicated region
      $region98: #{drug_mixedfp_forward.1} parent=5 // pred_check
        %p2262 = pneg %p2261
      $region99: #{drug_mixedfp_forward.1} parent=5 // pred_check_branch
        %2264 = sbr.rel (%p2262) target = $region101
      $region100: #{drug_mixedfp_forward.1} parent=5 // pred_region
        %s2265 = ssub.s32 %s12, 2
      $region101: #{drug_mixedfp_forward.1} parent=5 // pred_fallthru
        _
    $region6: #{drug_mixedfp_forward.1} parent=1 // loop_footer
      %s16 = sadd.s32 1, %s12
    $region7: #{drug_mixedfp_forward.1} parent=1 // loop_footer_branch
      %11 = sbr.rel target = $region3
    $region8: #{drug_mixedfp_forward.1} parent=1 // loop_exit
      _
    %2266 = vsyncpa [#allocation5], 1
    %s2267 = scalar_lea.sflag [#allocation5], 1
    %2268 = vsyncpa %s2267, 1

</llo_original>
